<compile_context>
chip_gen: v7x
topology: tpu7x:2x2x1
jax: 0.10.0
libtpu: 0.0.40
codegen_flags: <defaults>
</compile_context>

<pallas_src>
import functools
import random

import jax
import jax.numpy as jnp
import numpy as np
from jax.experimental import pallas as pl
from jax.experimental.pallas import tpu as pltpu

SOS_token = 1
EOS_token = 2

LANE = 128          # lane-padded size for hidden / embed / vocab dims
NEG_INF = -1e30


# ----------------------------------------------------------------------------- helpers
def _pad_to(x, shape):
    """Zero-pad array x into the top-left corner of a zeros(shape) array."""
    out = jnp.zeros(shape, jnp.float32)
    return out.at[tuple(slice(0, s) for s in x.shape)].set(x.astype(jnp.float32))


def _gru_cell_body(x, h, wih_ref, whh_ref, bih_ref, bhh_ref, l):
    """PyTorch GRU cell (gate order r, z, n). Gates live on a leading axis of the
    weight refs, so every slice is a full lane-aligned (in, H) tile."""
    gi_r = jnp.dot(x, wih_ref[l, 0], preferred_element_type=jnp.float32) + bih_ref[l, 0]
    gi_z = jnp.dot(x, wih_ref[l, 1], preferred_element_type=jnp.float32) + bih_ref[l, 1]
    gi_n = jnp.dot(x, wih_ref[l, 2], preferred_element_type=jnp.float32) + bih_ref[l, 2]
    gh_r = jnp.dot(h, whh_ref[l, 0], preferred_element_type=jnp.float32) + bhh_ref[l, 0]
    gh_z = jnp.dot(h, whh_ref[l, 1], preferred_element_type=jnp.float32) + bhh_ref[l, 1]
    gh_n = jnp.dot(h, whh_ref[l, 2], preferred_element_type=jnp.float32) + bhh_ref[l, 2]
    r = jax.nn.sigmoid(gi_r + gh_r)
    z = jax.nn.sigmoid(gi_z + gh_z)
    n = jnp.tanh(gi_n + r * gh_n)
    return (1.0 - z) * n + z * h


# ----------------------------------------------------------------------------- fused kernels
def _encoder_kernel(x_ref, wih_ref, whh_ref, bih_ref, bhh_ref,
                    out_ref, hfin_ref, h_scr, *, n_layers):
    """Whole multi-layer GRU encoder: grid=(T,) sequential steps; hidden state carried in
    VMEM scratch; weights resident across the grid (constant index_maps)."""
    t = pl.program_id(0)

    @pl.when(t == 0)
    def _():
        h_scr[...] = jnp.zeros_like(h_scr)

    x = x_ref[0]                                     # (1, LANE) embedded token
    for l in range(n_layers):
        h_new = _gru_cell_body(x, h_scr[l], wih_ref, whh_ref, bih_ref, bhh_ref, l)
        h_scr[l] = h_new
        x = h_new
    out_ref[0] = x                                   # top-layer hidden for this step
    hfin_ref[...] = h_scr[...]                       # final hidden (last write wins)


def _decoder_kernel(tok_ref, emb_ref, h_ref, meta_ref,
                    wih_ref, whh_ref, bih_ref, bhh_ref, ow_ref, ob_ref,
                    probs_ref, hnew_ref, *, n_layers, enc_hidden, vocab):
    """One full decode step: [narrow hidden to enc_hidden + concat metadata] per layer,
    n_layer GRU stack, output projection, softmax.  The token's embedding row was already
    gathered via the scalar-prefetch index_map (emb_ref holds exactly that row)."""
    del tok_ref  # only used by the index_map gather
    x = emb_ref[0]                                   # (1, LANE)
    lane = jax.lax.broadcasted_iota(jnp.int32, (1, LANE), 1)
    meta_row = meta_ref[...]                         # meta at lanes [enc_hidden, enc_hidden+M)
    for l in range(n_layers):
        # torch.narrow(h, 2, 0, enc_hidden) + torch.cat((h, meta), 2), lane-select form
        h_in = jnp.where(lane < enc_hidden, h_ref[l], meta_row)
        h_new = _gru_cell_body(x, h_in, wih_ref, whh_ref, bih_ref, bhh_ref, l)
        hnew_ref[l] = h_new
        x = h_new
    logits = jnp.dot(x, ow_ref[...], preferred_element_type=jnp.float32) + ob_ref[...]
    logits = jnp.where(lane < vocab, logits, NEG_INF)    # mask lane padding
    m = jnp.max(logits, axis=-1, keepdims=True)
    e = jnp.exp(logits - m)
    probs_ref[...] = e * pl.reciprocal(jnp.sum(e, axis=-1, keepdims=True), approx=True)


# ----------------------------------------------------------------------------- parameter init
def _init_gru_stack(key, n_layers, input_size, hidden_size):
    """Per-layer GRU weights, gate-major layout, zero-padded to (LANE, LANE) tiles."""
    wih_l, whh_l, bih_l, bhh_l = [], [], [], []
    for l in range(n_layers):
        in_sz = input_size if l == 0 else hidden_size
        key, k1, k2, k3, k4 = jax.random.split(key, 5)
        wih_l.append(_pad_to(0.1 * jax.random.normal(k1, (3, in_sz, hidden_size)),
                             (3, LANE, LANE)))
        whh_l.append(_pad_to(0.1 * jax.random.normal(k2, (3, hidden_size, hidden_size)),
                             (3, LANE, LANE)))
        bih_l.append(_pad_to(0.1 * jax.random.normal(k3, (3, 1, hidden_size)),
                             (3, 1, LANE)))
        bhh_l.append(_pad_to(0.1 * jax.random.normal(k4, (3, 1, hidden_size)),
                             (3, 1, LANE)))
    return (jnp.stack(wih_l), jnp.stack(whh_l),
            jnp.stack(bih_l), jnp.stack(bhh_l), key)


class Encoder:
    """Embedding + multi-layer GRU.  Input (seq_len, 1) int32 tokens; one fused kernel."""

    def __init__(self, key, vocab, embed, hidden_size, n_layers):
        assert embed <= LANE and hidden_size <= LANE
        self.hidden_size = hidden_size
        self.n_layers = n_layers
        key, ke = jax.random.split(key)
        emb = 0.1 * jax.random.normal(ke, (vocab, embed), jnp.float32)
        self.emb_padded = _pad_to(emb, (vocab, LANE))            # (V, LANE)
        self.wih, self.whh, self.bih, self.bhh, _ = _init_gru_stack(
            key, n_layers, embed, hidden_size)
        self._calls = {}

    def _get_call(self, T):
        if T in self._calls:
            return self._calls[T]
        L = self.n_layers
        kern = functools.partial(_encoder_kernel, n_layers=L)
        fn = pl.pallas_call(
            kern,
            out_shape=(jax.ShapeDtypeStruct((T, 1, LANE), jnp.float32),
                       jax.ShapeDtypeStruct((L, 1, LANE), jnp.float32)),
            grid_spec=pltpu.PrefetchScalarGridSpec(
                num_scalar_prefetch=0,
                grid=(T,),
                in_specs=[
                    pl.BlockSpec((1, 1, LANE), lambda t: (t, 0, 0)),           # emb[t]
                    pl.BlockSpec((L, 3, LANE, LANE), lambda t: (0, 0, 0, 0)),  # wih (resident)
                    pl.BlockSpec((L, 3, LANE, LANE), lambda t: (0, 0, 0, 0)),  # whh (resident)
                    pl.BlockSpec((L, 3, 1, LANE), lambda t: (0, 0, 0, 0)),     # bih
                    pl.BlockSpec((L, 3, 1, LANE), lambda t: (0, 0, 0, 0)),     # bhh
                ],
                out_specs=[
                    pl.BlockSpec((1, 1, LANE), lambda t: (t, 0, 0)),           # per-step output
                    pl.BlockSpec((L, 1, LANE), lambda t: (0, 0, 0)),           # final hidden
                ],
                scratch_shapes=[pltpu.VMEM((L, 1, LANE), jnp.float32)],
            ),
            compiler_params=pltpu.CompilerParams(
                dimension_semantics=("arbitrary",)),               # recurrent -> sequential
        )
        jfn = jax.jit(fn)
        self._calls[T] = jfn
        return jfn

    def __call__(self, input_seq, input_length):
        T = int(input_length)
        emb = self.emb_padded[input_seq[:T, 0]][:, None, :]        # (T, 1, LANE)
        enc_out, enc_hidden = self._get_call(T)(
            emb, self.wih, self.whh, self.bih, self.bhh)
        return enc_out, enc_hidden                                 # (T,1,LANE), (L,1,LANE)


class Decoder:
    """Embedding + multi-layer GRU (hidden = enc_hidden + meta_len) + softmax output.
    The whole decode step is a single fused Pallas kernel; the narrow+concat of metadata
    from the reference GreedySearchDecoder loop is folded in via `meta_row`.

    # TODO(synk): the original chatbot decoder has Luong attention over encoder_outputs;
    # the reference forward overwrites encoder_outputs with decoder_hidden, so attention
    # is omitted in this synthetic decoder (same as the previous accepted version).
    """

    def __init__(self, key, vocab, embed, enc_hidden, meta_len, n_layers):
        dh = enc_hidden + meta_len
        assert embed <= LANE and dh <= LANE and vocab <= LANE
        self.n_layers = n_layers
        self.vocab = vocab
        self.enc_hidden = enc_hidden
        self.hidden_size = dh
        key, ke, ko, kb = jax.random.split(key, 4)
        emb = 0.1 * jax.random.normal(ke, (vocab, embed), jnp.float32)
        self.emb_padded = _pad_to(emb, (vocab, LANE))[:, None, :]  # (V, 1, LANE)
        self.wih, self.whh, self.bih, self.bhh, _ = _init_gru_stack(
            key, n_layers, embed, dh)
        self.out_w = _pad_to(0.1 * jax.random.normal(ko, (dh, vocab)), (LANE, LANE))
        self.out_b = _pad_to(0.1 * jax.random.normal(kb, (1, vocab)), (1, LANE))
        self._step_cache = {}

    def _build_step(self, k_top):
        L = self.n_layers
        kern = functools.partial(_decoder_kernel, n_layers=L,
                                 enc_hidden=self.enc_hidden, vocab=self.vocab)
        pallas_step = pl.pallas_call(
            kern,
            out_shape=(jax.ShapeDtypeStruct((1, LANE), jnp.float32),      # softmax probs
                       jax.ShapeDtypeStruct((L, 1, LANE), jnp.float32)),  # new hidden
            grid_spec=pltpu.PrefetchScalarGridSpec(
                num_scalar_prefetch=1,          # token id in SMEM, drives embedding gather
                grid=(1,),
                in_specs=[
                    pl.BlockSpec((1, 1, LANE), lambda i, tok: (tok[0], 0, 0)),   # emb row
                    pl.BlockSpec((L, 1, LANE), lambda i, tok: (0, 0, 0)),        # hidden
                    pl.BlockSpec((1, LANE), lambda i, tok: (0, 0)),              # meta row
                    pl.BlockSpec((L, 3, LANE, LANE), lambda i, tok: (0, 0, 0, 0)),
                    pl.BlockSpec((L, 3, LANE, LANE), lambda i, tok: (0, 0, 0, 0)),
                    pl.BlockSpec((L, 3, 1, LANE), lambda i, tok: (0, 0, 0, 0)),
                    pl.BlockSpec((L, 3, 1, LANE), lambda i, tok: (0, 0, 0, 0)),
                    pl.BlockSpec((LANE, LANE), lambda i, tok: (0, 0)),           # out_w
                    pl.BlockSpec((1, LANE), lambda i, tok: (0, 0)),              # out_b
                ],
                out_specs=[
                    pl.BlockSpec((1, LANE), lambda i, tok: (0, 0)),
                    pl.BlockSpec((L, 1, LANE), lambda i, tok: (0, 0, 0)),
                ],
            ),
            compiler_params=pltpu.CompilerParams(
                dimension_semantics=("arbitrary",)),
        )
        V = self.vocab
        emb, wih, whh, bih, bhh = self.emb_padded, self.wih, self.whh, self.bih, self.bhh
        ow, ob = self.out_w, self.out_b

        def _step(tok_arr, hidden, meta_row):
            probs, new_h = pallas_step(tok_arr, emb, hidden, meta_row,
                                       wih, whh, bih, bhh, ow, ob)
            scores, indexs = jax.lax.top_k(probs[:, :V], k_top)
            return scores, indexs, new_h

        return jax.jit(_step)

    def step(self, tok_arr, hidden, meta_row, k_top):
        if k_top not in self._step_cache:
            self._step_cache[k_top] = self._build_step(k_top)
        return self._step_cache[k_top](tok_arr, hidden, meta_row)


# ----------------------------------------------------------------------------- GreedySearchDecoder
class GreedySearchDecoder:
    def __init__(self, encoder, decoder, top_n, threshold):
        self.encoder = encoder
        self.decoder = decoder
        self.top_n = top_n
        self.threshold = threshold

    def forward(self, input_seq, metadata, input_length, max_length):
        _, encoder_hidden = self.encoder(input_seq, input_length)
        decoder_hidden = encoder_hidden[: self.decoder.n_layers]

        # metadata placed at lanes [enc_hidden, enc_hidden+M): equivalent to the reference
        # per-step narrow(enc_hidden) + cat(metadata) — built once, applied inside the kernel.
        H = self.encoder.hidden_size
        meta_row = jnp.zeros((1, LANE), jnp.float32).at[
            0, H:H + len(metadata)].set(jnp.asarray(metadata, jnp.float32))

        prev_token = SOS_token
        toks, scs = [], []
        k_top = self.top_n + 1
        for i in range(max_length):
            tok_arr = jnp.asarray([prev_token], dtype=jnp.int32)
            scores, indexs, decoder_hidden = self.decoder.step(
                tok_arr, decoder_hidden, meta_row, k_top)
            # Single tiny device->host transfer per step (required: pickIndex uses host
            # `random` exactly like the reference, and the loop breaks on EOS).
            scores_np = np.asarray(scores[0])
            indexs_np = np.asarray(indexs[0])
            r = self.pickIndex(scores_np, indexs_np, prev_token, i)
            tok = int(indexs_np[r])
            sc = float(scores_np[r])
            toks.append(tok)
            scs.append(sc)
            prev_token = tok
            if tok == EOS_token:
                break
        all_tokens = jnp.asarray(toks, dtype=jnp.int32)
        all_scores = jnp.asarray(scs, dtype=jnp.float32)
        return all_tokens, all_scores

    def pickIndex(self, scores_row, indexs_row, previous_token, length):
        probs = [float(p) for p in scores_row]
        opts = list(range(len(indexs_row)))
        if 2 in opts and length < 10:
            probs[opts.index(2)] /= 10 / (length + 1)
        mn, ind = (1, 0)
        for i in range(len(probs)):
            if probs[i] < mn:
                mn = probs[i]
                ind = i
        probs[ind] = 0
        probs = [p if p >= self.threshold else 0 for p in probs]
        if probs[0] == 0:
            probs[0] = 1
        r = random.choices(opts, probs)[0]
        if int(indexs_row[r]) == int(previous_token) and len(probs) != 1:
            probs[r] = 0
            r = random.choices(opts, probs)[0]
        return r


# ----------------------------------------------------------------------------- main
if __name__ == "__main__":
    random.seed(0)

    VOCAB = 64
    EMBED = 32
    HIDDEN = 32          # encoder hidden size
    META_LEN = 4
    N_LAYERS = 2
    TOP_N = 3
    THRESHOLD = 1e-3
    SEQ_LEN = 6
    MAX_LENGTH = 8

    key = jax.random.PRNGKey(0)
    k_enc, k_dec, k_in, k_meta = jax.random.split(key, 4)

    encoder = Encoder(k_enc, VOCAB, EMBED, HIDDEN, N_LAYERS)
    decoder = Decoder(k_dec, VOCAB, EMBED, HIDDEN, META_LEN, N_LAYERS)
    searcher = GreedySearchDecoder(encoder, decoder, TOP_N, THRESHOLD)

    input_seq = jax.random.randint(k_in, (SEQ_LEN, 1), 3, VOCAB, dtype=jnp.int32)
    metadata = [float(v) for v in np.asarray(
        jax.random.uniform(k_meta, (META_LEN,), jnp.float32))]

    all_tokens, all_scores = searcher.forward(input_seq, metadata, SEQ_LEN, MAX_LENGTH)
    jax.block_until_ready(all_tokens)
    jax.block_until_ready(all_scores)
    assert all_tokens.shape[0] == all_scores.shape[0]
    assert all_tokens.shape[0] >= 1
    assert bool(jnp.all(all_tokens < VOCAB)) and bool(jnp.all(all_tokens >= 0))
    print("KERNEL_OK")
</pallas_src>

<mosaic_0001>
module attributes {stable_mosaic.version = 11 : i64} {
  func.func @_encoder_kernel(%arg0: i32, %arg1: memref<1x1x128xf32, #tpu.memory_space<vmem>>, %arg2: memref<2x3x128x128xf32, #tpu.memory_space<vmem>>, %arg3: memref<2x3x128x128xf32, #tpu.memory_space<vmem>>, %arg4: memref<2x3x1x128xf32, #tpu.memory_space<vmem>>, %arg5: memref<2x3x1x128xf32, #tpu.memory_space<vmem>>, %arg6: memref<1x1x128xf32, #tpu.memory_space<vmem>>, %arg7: memref<2x1x128xf32, #tpu.memory_space<vmem>>, %arg8: memref<2x1x128xf32, #tpu.memory_space<vmem>>) attributes {dimension_semantics = [#tpu.dimension_semantics<arbitrary>], iteration_bounds = array<i64: 6>, scalar_prefetch = 0 : i64, scratch_operands = 1 : i64, tpu.core_type = #tpu.core_type<tc>, window_params = [{transform_indices = @transform_0, window_bounds = array<i64: 1, 1, 128>}, {pipeline_mode = #tpu.pipeline_mode<synchronous>, transform_indices = @transform_1, window_bounds = array<i64: 2, 3, 128, 128>}, {pipeline_mode = #tpu.pipeline_mode<synchronous>, transform_indices = @transform_2, window_bounds = array<i64: 2, 3, 128, 128>}, {pipeline_mode = #tpu.pipeline_mode<synchronous>, transform_indices = @transform_3, window_bounds = array<i64: 2, 3, 1, 128>}, {pipeline_mode = #tpu.pipeline_mode<synchronous>, transform_indices = @transform_4, window_bounds = array<i64: 2, 3, 1, 128>}, {transform_indices = @transform_5, window_bounds = array<i64: 1, 1, 128>}, {pipeline_mode = #tpu.pipeline_mode<synchronous>, transform_indices = @transform_6, window_bounds = array<i64: 2, 1, 128>}]} {
    %c0_i32 = arith.constant 0 : i32
    %0 = arith.cmpi eq, %arg0, %c0_i32 : i32
    %1 = arith.extui %0 : i1 to i32
    %c0_i32_0 = arith.constant 0 : i32
    %2 = arith.cmpi ne, %1, %c0_i32_0 : i32
    scf.if %2 {
      %cst_135 = arith.constant 0.000000e+00 : f32
      %132 = vector.broadcast %cst_135 : f32 to vector<2x1x128xf32>
      %c0_136 = arith.constant 0 : index
      %c0_137 = arith.constant 0 : index
      %c0_138 = arith.constant 0 : index
      %133 = vector.load %arg8[%c0_136, %c0_137, %c0_138] : memref<2x1x128xf32, #tpu.memory_space<vmem>>, vector<2x1x128xf32>
      tpu.vector_store %arg8[%c0_136, %c0_137, %c0_138], %132 {strides = array<i32>} : memref<2x1x128xf32, #tpu.memory_space<vmem>>, vector<2x1x128xf32>,
    } else {
    }
    %c0 = arith.constant 0 : index
    %c0_1 = arith.constant 0 : index
    %c0_2 = arith.constant 0 : index
    %3 = vector.load %arg1[%c0, %c0_1, %c0_2] : memref<1x1x128xf32, #tpu.memory_space<vmem>>, vector<1x1x128xf32>
    %4 = vector.shape_cast %3 : vector<1x1x128xf32> to vector<1x128xf32>
    %c0_3 = arith.constant 0 : index
    %c0_4 = arith.constant 0 : index
    %c0_5 = arith.constant 0 : index
    %5 = vector.load %arg8[%c0_3, %c0_4, %c0_5] : memref<2x1x128xf32, #tpu.memory_space<vmem>>, vector<1x1x128xf32>
    %6 = vector.shape_cast %5 : vector<1x1x128xf32> to vector<1x128xf32>
    %c0_6 = arith.constant 0 : index
    %c0_7 = arith.constant 0 : index
    %c0_8 = arith.constant 0 : index
    %c0_9 = arith.constant 0 : index
    %7 = vector.load %arg2[%c0_6, %c0_7, %c0_8, %c0_9] : memref<2x3x128x128xf32, #tpu.memory_space<vmem>>, vector<1x1x128x128xf32>
    %8 = vector.shape_cast %7 : vector<1x1x128x128xf32> to vector<128x128xf32>
    %cst = arith.constant dense<0.000000e+00> : vector<1x128xf32>
    %9 = tpu.matmul %4, %8, %cst {dimension_numbers = #tpu.dot_dimension_numbers<[1], [0], [0], [1], [0, 0, 1, 1], [], []>} : vector<1x128xf32>, vector<128x128xf32>, vector<1x128xf32> -> vector<1x128xf32>
    %c0_10 = arith.constant 0 : index
    %c0_11 = arith.constant 0 : index
    %c0_12 = arith.constant 0 : index
    %c0_13 = arith.constant 0 : index
    %10 = vector.load %arg4[%c0_10, %c0_11, %c0_12, %c0_13] : memref<2x3x1x128xf32, #tpu.memory_space<vmem>>, vector<1x1x1x128xf32>
    %11 = vector.shape_cast %10 : vector<1x1x1x128xf32> to vector<1x128xf32>
    %12 = arith.addf %9, %11 : vector<1x128xf32>
    %c0_14 = arith.constant 0 : index
    %c1 = arith.constant 1 : index
    %c0_15 = arith.constant 0 : index
    %c0_16 = arith.constant 0 : index
    %13 = vector.load %arg2[%c0_14, %c1, %c0_15, %c0_16] : memref<2x3x128x128xf32, #tpu.memory_space<vmem>>, vector<1x1x128x128xf32>
    %14 = vector.shape_cast %13 : vector<1x1x128x128xf32> to vector<128x128xf32>
    %cst_17 = arith.constant dense<0.000000e+00> : vector<1x128xf32>
    %15 = tpu.matmul %4, %14, %cst_17 {dimension_numbers = #tpu.dot_dimension_numbers<[1], [0], [0], [1], [0, 0, 1, 1], [], []>} : vector<1x128xf32>, vector<128x128xf32>, vector<1x128xf32> -> vector<1x128xf32>
    %c0_18 = arith.constant 0 : index
    %c1_19 = arith.constant 1 : index
    %c0_20 = arith.constant 0 : index
    %c0_21 = arith.constant 0 : index
    %16 = vector.load %arg4[%c0_18, %c1_19, %c0_20, %c0_21] : memref<2x3x1x128xf32, #tpu.memory_space<vmem>>, vector<1x1x1x128xf32>
    %17 = vector.shape_cast %16 : vector<1x1x1x128xf32> to vector<1x128xf32>
    %18 = arith.addf %15, %17 : vector<1x128xf32>
    %c0_22 = arith.constant 0 : index
    %c2 = arith.constant 2 : index
    %c0_23 = arith.constant 0 : index
    %c0_24 = arith.constant 0 : index
    %19 = vector.load %arg2[%c0_22, %c2, %c0_23, %c0_24] : memref<2x3x128x128xf32, #tpu.memory_space<vmem>>, vector<1x1x128x128xf32>
    %20 = vector.shape_cast %19 : vector<1x1x128x128xf32> to vector<128x128xf32>
    %cst_25 = arith.constant dense<0.000000e+00> : vector<1x128xf32>
    %21 = tpu.matmul %4, %20, %cst_25 {dimension_numbers = #tpu.dot_dimension_numbers<[1], [0], [0], [1], [0, 0, 1, 1], [], []>} : vector<1x128xf32>, vector<128x128xf32>, vector<1x128xf32> -> vector<1x128xf32>
    %c0_26 = arith.constant 0 : index
    %c2_27 = arith.constant 2 : index
    %c0_28 = arith.constant 0 : index
    %c0_29 = arith.constant 0 : index
    %22 = vector.load %arg4[%c0_26, %c2_27, %c0_28, %c0_29] : memref<2x3x1x128xf32, #tpu.memory_space<vmem>>, vector<1x1x1x128xf32>
    %23 = vector.shape_cast %22 : vector<1x1x1x128xf32> to vector<1x128xf32>
    %24 = arith.addf %21, %23 : vector<1x128xf32>
    %c0_30 = arith.constant 0 : index
    %c0_31 = arith.constant 0 : index
    %c0_32 = arith.constant 0 : index
    %c0_33 = arith.constant 0 : index
    %25 = vector.load %arg3[%c0_30, %c0_31, %c0_32, %c0_33] : memref<2x3x128x128xf32, #tpu.memory_space<vmem>>, vector<1x1x128x128xf32>
    %26 = vector.shape_cast %25 : vector<1x1x128x128xf32> to vector<128x128xf32>
    %cst_34 = arith.constant dense<0.000000e+00> : vector<1x128xf32>
    %27 = tpu.matmul %6, %26, %cst_34 {dimension_numbers = #tpu.dot_dimension_numbers<[1], [0], [0], [1], [0, 0, 1, 1], [], []>} : vector<1x128xf32>, vector<128x128xf32>, vector<1x128xf32> -> vector<1x128xf32>
    %c0_35 = arith.constant 0 : index
    %c0_36 = arith.constant 0 : index
    %c0_37 = arith.constant 0 : index
    %c0_38 = arith.constant 0 : index
    %28 = vector.load %arg5[%c0_35, %c0_36, %c0_37, %c0_38] : memref<2x3x1x128xf32, #tpu.memory_space<vmem>>, vector<1x1x1x128xf32>
    %29 = vector.shape_cast %28 : vector<1x1x1x128xf32> to vector<1x128xf32>
    %30 = arith.addf %27, %29 : vector<1x128xf32>
    %c0_39 = arith.constant 0 : index
    %c1_40 = arith.constant 1 : index
    %c0_41 = arith.constant 0 : index
    %c0_42 = arith.constant 0 : index
    %31 = vector.load %arg3[%c0_39, %c1_40, %c0_41, %c0_42] : memref<2x3x128x128xf32, #tpu.memory_space<vmem>>, vector<1x1x128x128xf32>
    %32 = vector.shape_cast %31 : vector<1x1x128x128xf32> to vector<128x128xf32>
    %cst_43 = arith.constant dense<0.000000e+00> : vector<1x128xf32>
    %33 = tpu.matmul %6, %32, %cst_43 {dimension_numbers = #tpu.dot_dimension_numbers<[1], [0], [0], [1], [0, 0, 1, 1], [], []>} : vector<1x128xf32>, vector<128x128xf32>, vector<1x128xf32> -> vector<1x128xf32>
    %c0_44 = arith.constant 0 : index
    %c1_45 = arith.constant 1 : index
    %c0_46 = arith.constant 0 : index
    %c0_47 = arith.constant 0 : index
    %34 = vector.load %arg5[%c0_44, %c1_45, %c0_46, %c0_47] : memref<2x3x1x128xf32, #tpu.memory_space<vmem>>, vector<1x1x1x128xf32>
    %35 = vector.shape_cast %34 : vector<1x1x1x128xf32> to vector<1x128xf32>
    %36 = arith.addf %33, %35 : vector<1x128xf32>
    %c0_48 = arith.constant 0 : index
    %c2_49 = arith.constant 2 : index
    %c0_50 = arith.constant 0 : index
    %c0_51 = arith.constant 0 : index
    %37 = vector.load %arg3[%c0_48, %c2_49, %c0_50, %c0_51] : memref<2x3x128x128xf32, #tpu.memory_space<vmem>>, vector<1x1x128x128xf32>
    %38 = vector.shape_cast %37 : vector<1x1x128x128xf32> to vector<128x128xf32>
    %cst_52 = arith.constant dense<0.000000e+00> : vector<1x128xf32>
    %39 = tpu.matmul %6, %38, %cst_52 {dimension_numbers = #tpu.dot_dimension_numbers<[1], [0], [0], [1], [0, 0, 1, 1], [], []>} : vector<1x128xf32>, vector<128x128xf32>, vector<1x128xf32> -> vector<1x128xf32>
    %c0_53 = arith.constant 0 : index
    %c2_54 = arith.constant 2 : index
    %c0_55 = arith.constant 0 : index
    %c0_56 = arith.constant 0 : index
    %40 = vector.load %arg5[%c0_53, %c2_54, %c0_55, %c0_56] : memref<2x3x1x128xf32, #tpu.memory_space<vmem>>, vector<1x1x1x128xf32>
    %41 = vector.shape_cast %40 : vector<1x1x1x128xf32> to vector<1x128xf32>
    %42 = arith.addf %39, %41 : vector<1x128xf32>
    %43 = arith.addf %12, %30 : vector<1x128xf32>
    %44 = arith.negf %43 : vector<1x128xf32>
    %45 = math.exp %44 : vector<1x128xf32>
    %cst_57 = arith.constant 1.000000e+00 : f32
    %46 = vector.broadcast %cst_57 : f32 to vector<1x128xf32>
    %47 = arith.addf %46, %45 : vector<1x128xf32>
    %48 = arith.divf %46, %47 : vector<1x128xf32>
    %49 = arith.addf %18, %36 : vector<1x128xf32>
    %50 = arith.negf %49 : vector<1x128xf32>
    %51 = math.exp %50 : vector<1x128xf32>
    %cst_58 = arith.constant 1.000000e+00 : f32
    %52 = vector.broadcast %cst_58 : f32 to vector<1x128xf32>
    %53 = arith.addf %52, %51 : vector<1x128xf32>
    %54 = arith.divf %52, %53 : vector<1x128xf32>
    %55 = arith.mulf %48, %42 : vector<1x128xf32>
    %56 = arith.addf %24, %55 : vector<1x128xf32>
    %57 = math.tanh %56 : vector<1x128xf32>
    %cst_59 = arith.constant 1.000000e+00 : f32
    %58 = vector.broadcast %cst_59 : f32 to vector<1x128xf32>
    %59 = arith.subf %58, %54 : vector<1x128xf32>
    %60 = arith.mulf %59, %57 : vector<1x128xf32>
    %61 = arith.mulf %54, %6 : vector<1x128xf32>
    %62 = arith.addf %60, %61 : vector<1x128xf32>
    %c0_60 = arith.constant 0 : index
    %c0_61 = arith.constant 0 : index
    %c0_62 = arith.constant 0 : index
    %63 = vector.load %arg8[%c0_60, %c0_61, %c0_62] : memref<2x1x128xf32, #tpu.memory_space<vmem>>, vector<1x1x128xf32>
    %64 = vector.shape_cast %63 : vector<1x1x128xf32> to vector<1x128xf32>
    %65 = vector.shape_cast %62 : vector<1x128xf32> to vector<1x1x128xf32>
    tpu.vector_store %arg8[%c0_60, %c0_61, %c0_62], %65 {strides = array<i32>} : memref<2x1x128xf32, #tpu.memory_space<vmem>>, vector<1x1x128xf32>,
    %c1_63 = arith.constant 1 : index
    %c0_64 = arith.constant 0 : index
    %c0_65 = arith.constant 0 : index
    %66 = vector.load %arg8[%c1_63, %c0_64, %c0_65] : memref<2x1x128xf32, #tpu.memory_space<vmem>>, vector<1x1x128xf32>
    %67 = vector.shape_cast %66 : vector<1x1x128xf32> to vector<1x128xf32>
    %c1_66 = arith.constant 1 : index
    %c0_67 = arith.constant 0 : index
    %c0_68 = arith.constant 0 : index
    %c0_69 = arith.constant 0 : index
    %68 = vector.load %arg2[%c1_66, %c0_67, %c0_68, %c0_69] : memref<2x3x128x128xf32, #tpu.memory_space<vmem>>, vector<1x1x128x128xf32>
    %69 = vector.shape_cast %68 : vector<1x1x128x128xf32> to vector<128x128xf32>
    %cst_70 = arith.constant dense<0.000000e+00> : vector<1x128xf32>
    %70 = tpu.matmul %62, %69, %cst_70 {dimension_numbers = #tpu.dot_dimension_numbers<[1], [0], [0], [1], [0, 0, 1, 1], [], []>} : vector<1x128xf32>, vector<128x128xf32>, vector<1x128xf32> -> vector<1x128xf32>
    %c1_71 = arith.constant 1 : index
    %c0_72 = arith.constant 0 : index
    %c0_73 = arith.constant 0 : index
    %c0_74 = arith.constant 0 : index
    %71 = vector.load %arg4[%c1_71, %c0_72, %c0_73, %c0_74] : memref<2x3x1x128xf32, #tpu.memory_space<vmem>>, vector<1x1x1x128xf32>
    %72 = vector.shape_cast %71 : vector<1x1x1x128xf32> to vector<1x128xf32>
    %73 = arith.addf %70, %72 : vector<1x128xf32>
    %c1_75 = arith.constant 1 : index
    %c1_76 = arith.constant 1 : index
    %c0_77 = arith.constant 0 : index
    %c0_78 = arith.constant 0 : index
    %74 = vector.load %arg2[%c1_75, %c1_76, %c0_77, %c0_78] : memref<2x3x128x128xf32, #tpu.memory_space<vmem>>, vector<1x1x128x128xf32>
    %75 = vector.shape_cast %74 : vector<1x1x128x128xf32> to vector<128x128xf32>
    %cst_79 = arith.constant dense<0.000000e+00> : vector<1x128xf32>
    %76 = tpu.matmul %62, %75, %cst_79 {dimension_numbers = #tpu.dot_dimension_numbers<[1], [0], [0], [1], [0, 0, 1, 1], [], []>} : vector<1x128xf32>, vector<128x128xf32>, vector<1x128xf32> -> vector<1x128xf32>
    %c1_80 = arith.constant 1 : index
    %c1_81 = arith.constant 1 : index
    %c0_82 = arith.constant 0 : index
    %c0_83 = arith.constant 0 : index
    %77 = vector.load %arg4[%c1_80, %c1_81, %c0_82, %c0_83] : memref<2x3x1x128xf32, #tpu.memory_space<vmem>>, vector<1x1x1x128xf32>
    %78 = vector.shape_cast %77 : vector<1x1x1x128xf32> to vector<1x128xf32>
    %79 = arith.addf %76, %78 : vector<1x128xf32>
    %c1_84 = arith.constant 1 : index
    %c2_85 = arith.constant 2 : index
    %c0_86 = arith.constant 0 : index
    %c0_87 = arith.constant 0 : index
    %80 = vector.load %arg2[%c1_84, %c2_85, %c0_86, %c0_87] : memref<2x3x128x128xf32, #tpu.memory_space<vmem>>, vector<1x1x128x128xf32>
    %81 = vector.shape_cast %80 : vector<1x1x128x128xf32> to vector<128x128xf32>
    %cst_88 = arith.constant dense<0.000000e+00> : vector<1x128xf32>
    %82 = tpu.matmul %62, %81, %cst_88 {dimension_numbers = #tpu.dot_dimension_numbers<[1], [0], [0], [1], [0, 0, 1, 1], [], []>} : vector<1x128xf32>, vector<128x128xf32>, vector<1x128xf32> -> vector<1x128xf32>
    %c1_89 = arith.constant 1 : index
    %c2_90 = arith.constant 2 : index
    %c0_91 = arith.constant 0 : index
    %c0_92 = arith.constant 0 : index
    %83 = vector.load %arg4[%c1_89, %c2_90, %c0_91, %c0_92] : memref<2x3x1x128xf32, #tpu.memory_space<vmem>>, vector<1x1x1x128xf32>
    %84 = vector.shape_cast %83 : vector<1x1x1x128xf32> to vector<1x128xf32>
    %85 = arith.addf %82, %84 : vector<1x128xf32>
    %c1_93 = arith.constant 1 : index
    %c0_94 = arith.constant 0 : index
    %c0_95 = arith.constant 0 : index
    %c0_96 = arith.constant 0 : index
    %86 = vector.load %arg3[%c1_93, %c0_94, %c0_95, %c0_96] : memref<2x3x128x128xf32, #tpu.memory_space<vmem>>, vector<1x1x128x128xf32>
    %87 = vector.shape_cast %86 : vector<1x1x128x128xf32> to vector<128x128xf32>
    %cst_97 = arith.constant dense<0.000000e+00> : vector<1x128xf32>
    %88 = tpu.matmul %67, %87, %cst_97 {dimension_numbers = #tpu.dot_dimension_numbers<[1], [0], [0], [1], [0, 0, 1, 1], [], []>} : vector<1x128xf32>, vector<128x128xf32>, vector<1x128xf32> -> vector<1x128xf32>
    %c1_98 = arith.constant 1 : index
    %c0_99 = arith.constant 0 : index
    %c0_100 = arith.constant 0 : index
    %c0_101 = arith.constant 0 : index
    %89 = vector.load %arg5[%c1_98, %c0_99, %c0_100, %c0_101] : memref<2x3x1x128xf32, #tpu.memory_space<vmem>>, vector<1x1x1x128xf32>
    %90 = vector.shape_cast %89 : vector<1x1x1x128xf32> to vector<1x128xf32>
    %91 = arith.addf %88, %90 : vector<1x128xf32>
    %c1_102 = arith.constant 1 : index
    %c1_103 = arith.constant 1 : index
    %c0_104 = arith.constant 0 : index
    %c0_105 = arith.constant 0 : index
    %92 = vector.load %arg3[%c1_102, %c1_103, %c0_104, %c0_105] : memref<2x3x128x128xf32, #tpu.memory_space<vmem>>, vector<1x1x128x128xf32>
    %93 = vector.shape_cast %92 : vector<1x1x128x128xf32> to vector<128x128xf32>
    %cst_106 = arith.constant dense<0.000000e+00> : vector<1x128xf32>
    %94 = tpu.matmul %67, %93, %cst_106 {dimension_numbers = #tpu.dot_dimension_numbers<[1], [0], [0], [1], [0, 0, 1, 1], [], []>} : vector<1x128xf32>, vector<128x128xf32>, vector<1x128xf32> -> vector<1x128xf32>
    %c1_107 = arith.constant 1 : index
    %c1_108 = arith.constant 1 : index
    %c0_109 = arith.constant 0 : index
    %c0_110 = arith.constant 0 : index
    %95 = vector.load %arg5[%c1_107, %c1_108, %c0_109, %c0_110] : memref<2x3x1x128xf32, #tpu.memory_space<vmem>>, vector<1x1x1x128xf32>
    %96 = vector.shape_cast %95 : vector<1x1x1x128xf32> to vector<1x128xf32>
    %97 = arith.addf %94, %96 : vector<1x128xf32>
    %c1_111 = arith.constant 1 : index
    %c2_112 = arith.constant 2 : index
    %c0_113 = arith.constant 0 : index
    %c0_114 = arith.constant 0 : index
    %98 = vector.load %arg3[%c1_111, %c2_112, %c0_113, %c0_114] : memref<2x3x128x128xf32, #tpu.memory_space<vmem>>, vector<1x1x128x128xf32>
    %99 = vector.shape_cast %98 : vector<1x1x128x128xf32> to vector<128x128xf32>
    %cst_115 = arith.constant dense<0.000000e+00> : vector<1x128xf32>
    %100 = tpu.matmul %67, %99, %cst_115 {dimension_numbers = #tpu.dot_dimension_numbers<[1], [0], [0], [1], [0, 0, 1, 1], [], []>} : vector<1x128xf32>, vector<128x128xf32>, vector<1x128xf32> -> vector<1x128xf32>
    %c1_116 = arith.constant 1 : index
    %c2_117 = arith.constant 2 : index
    %c0_118 = arith.constant 0 : index
    %c0_119 = arith.constant 0 : index
    %101 = vector.load %arg5[%c1_116, %c2_117, %c0_118, %c0_119] : memref<2x3x1x128xf32, #tpu.memory_space<vmem>>, vector<1x1x1x128xf32>
    %102 = vector.shape_cast %101 : vector<1x1x1x128xf32> to vector<1x128xf32>
    %103 = arith.addf %100, %102 : vector<1x128xf32>
    %104 = arith.addf %73, %91 : vector<1x128xf32>
    %105 = arith.negf %104 : vector<1x128xf32>
    %106 = math.exp %105 : vector<1x128xf32>
    %cst_120 = arith.constant 1.000000e+00 : f32
    %107 = vector.broadcast %cst_120 : f32 to vector<1x128xf32>
    %108 = arith.addf %107, %106 : vector<1x128xf32>
    %109 = arith.divf %107, %108 : vector<1x128xf32>
    %110 = arith.addf %79, %97 : vector<1x128xf32>
    %111 = arith.negf %110 : vector<1x128xf32>
    %112 = math.exp %111 : vector<1x128xf32>
    %cst_121 = arith.constant 1.000000e+00 : f32
    %113 = vector.broadcast %cst_121 : f32 to vector<1x128xf32>
    %114 = arith.addf %113, %112 : vector<1x128xf32>
    %115 = arith.divf %113, %114 : vector<1x128xf32>
    %116 = arith.mulf %109, %103 : vector<1x128xf32>
    %117 = arith.addf %85, %116 : vector<1x128xf32>
    %118 = math.tanh %117 : vector<1x128xf32>
    %cst_122 = arith.constant 1.000000e+00 : f32
    %119 = vector.broadcast %cst_122 : f32 to vector<1x128xf32>
    %120 = arith.subf %119, %115 : vector<1x128xf32>
    %121 = arith.mulf %120, %118 : vector<1x128xf32>
    %122 = arith.mulf %115, %67 : vector<1x128xf32>
    %123 = arith.addf %121, %122 : vector<1x128xf32>
    %c1_123 = arith.constant 1 : index
    %c0_124 = arith.constant 0 : index
    %c0_125 = arith.constant 0 : index
    %124 = vector.load %arg8[%c1_123, %c0_124, %c0_125] : memref<2x1x128xf32, #tpu.memory_space<vmem>>, vector<1x1x128xf32>
    %125 = vector.shape_cast %124 : vector<1x1x128xf32> to vector<1x128xf32>
    %126 = vector.shape_cast %123 : vector<1x128xf32> to vector<1x1x128xf32>
    tpu.vector_store %arg8[%c1_123, %c0_124, %c0_125], %126 {strides = array<i32>} : memref<2x1x128xf32, #tpu.memory_space<vmem>>, vector<1x1x128xf32>,
    %c0_126 = arith.constant 0 : index
    %c0_127 = arith.constant 0 : index
    %c0_128 = arith.constant 0 : index
    %127 = vector.load %arg6[%c0_126, %c0_127, %c0_128] : memref<1x1x128xf32, #tpu.memory_space<vmem>>, vector<1x1x128xf32>
    %128 = vector.shape_cast %127 : vector<1x1x128xf32> to vector<1x128xf32>
    %129 = vector.shape_cast %123 : vector<1x128xf32> to vector<1x1x128xf32>
    tpu.vector_store %arg6[%c0_126, %c0_127, %c0_128], %129 {strides = array<i32>} : memref<1x1x128xf32, #tpu.memory_space<vmem>>, vector<1x1x128xf32>,
    %c0_129 = arith.constant 0 : index
    %c0_130 = arith.constant 0 : index
    %c0_131 = arith.constant 0 : index
    %130 = vector.load %arg8[%c0_129, %c0_130, %c0_131] : memref<2x1x128xf32, #tpu.memory_space<vmem>>, vector<2x1x128xf32>
    %c0_132 = arith.constant 0 : index
    %c0_133 = arith.constant 0 : index
    %c0_134 = arith.constant 0 : index
    %131 = vector.load %arg7[%c0_132, %c0_133, %c0_134] : memref<2x1x128xf32, #tpu.memory_space<vmem>>, vector<2x1x128xf32>
    tpu.vector_store %arg7[%c0_132, %c0_133, %c0_134], %130 {strides = array<i32>} : memref<2x1x128xf32, #tpu.memory_space<vmem>>, vector<2x1x128xf32>,
    return
  }
  func.func @transform_0(%arg0: i32) -> (i32, i32, i32) {
    %c0_i32 = arith.constant 0 : i32
    %c0_i32_0 = arith.constant 0 : i32
    %c0_i32_1 = arith.constant 0 : i32
    return %arg0, %c0_i32, %c0_i32_0 : i32, i32, i32
  }
  func.func @transform_1(%arg0: i32) -> (i32, i32, i32, i32) {
    %c0_i32 = arith.constant 0 : i32
    %c0_i32_0 = arith.constant 0 : i32
    %c0_i32_1 = arith.constant 0 : i32
    %c0_i32_2 = arith.constant 0 : i32
    %c0_i32_3 = arith.constant 0 : i32
    return %c0_i32, %c0_i32_0, %c0_i32_1, %c0_i32_2 : i32, i32, i32, i32
  }
  func.func @transform_2(%arg0: i32) -> (i32, i32, i32, i32) {
    %c0_i32 = arith.constant 0 : i32
    %c0_i32_0 = arith.constant 0 : i32
    %c0_i32_1 = arith.constant 0 : i32
    %c0_i32_2 = arith.constant 0 : i32
    %c0_i32_3 = arith.constant 0 : i32
    return %c0_i32, %c0_i32_0, %c0_i32_1, %c0_i32_2 : i32, i32, i32, i32
  }
  func.func @transform_3(%arg0: i32) -> (i32, i32, i32, i32) {
    %c0_i32 = arith.constant 0 : i32
    %c0_i32_0 = arith.constant 0 : i32
    %c0_i32_1 = arith.constant 0 : i32
    %c0_i32_2 = arith.constant 0 : i32
    %c0_i32_3 = arith.constant 0 : i32
    return %c0_i32, %c0_i32_0, %c0_i32_1, %c0_i32_2 : i32, i32, i32, i32
  }
  func.func @transform_4(%arg0: i32) -> (i32, i32, i32, i32) {
    %c0_i32 = arith.constant 0 : i32
    %c0_i32_0 = arith.constant 0 : i32
    %c0_i32_1 = arith.constant 0 : i32
    %c0_i32_2 = arith.constant 0 : i32
    %c0_i32_3 = arith.constant 0 : i32
    return %c0_i32, %c0_i32_0, %c0_i32_1, %c0_i32_2 : i32, i32, i32, i32
  }
  func.func @transform_5(%arg0: i32) -> (i32, i32, i32) {
    %c0_i32 = arith.constant 0 : i32
    %c0_i32_0 = arith.constant 0 : i32
    %c0_i32_1 = arith.constant 0 : i32
    return %arg0, %c0_i32, %c0_i32_0 : i32, i32, i32
  }
  func.func @transform_6(%arg0: i32) -> (i32, i32, i32) {
    %c0_i32 = arith.constant 0 : i32
    %c0_i32_0 = arith.constant 0 : i32
    %c0_i32_1 = arith.constant 0 : i32
    %c0_i32_2 = arith.constant 0 : i32
    return %c0_i32, %c0_i32_0, %c0_i32_1 : i32, i32, i32
  }
}

</mosaic_0001>

<llo_original>
// kernel: tpu_custom_call.1
$region0: #{tpu_custom_call.1}
  #allocation0 [shape = 'u32[]', space=smem, size = 0x4, offset = 0x4, fixed_abs, tag = 'smem constant byte address 0x4 - core index']
  #allocation1 [shape = 'u32[144,128]{1,0:T(1,128)}', space=vmem, size = 0x12000, scoped, tag = 'internal scratch']
  #allocation2 [shape = 'f32[2,1,128]{2,1,0:T(1,128)}', space=vmem, size = 0x400, scoped, tag = 'scratch operand']
  %s0 = inlined_call_operand.hbm [shape: f32[6,1,128], index: 0, kind: input, shape index: {}]
  %s1 = inlined_call_operand.hbm [shape: f32[2,3,128,128], index: 1, kind: input, shape index: {}]
  %s2 = inlined_call_operand.hbm [shape: f32[2,3,128,128], index: 2, kind: input, shape index: {}]
  %s3 = inlined_call_operand.vmem [shape: f32[2,3,1,128], index: 3, kind: input, shape index: {}]
  %s4 = inlined_call_operand.vmem [shape: f32[2,3,1,128], index: 4, kind: input, shape index: {}]
  %s5 = inlined_call_operand.hbm [shape: f32[6,1,128], index: 5, kind: output, shape index: {0}]
  %s6 = inlined_call_operand.hbm [shape: f32[2,1,128], index: 6, kind: output, shape index: {1}]
  %7 = xla_tuple %s5, %s6
  %s8 = sld [smem:[#allocation0]]
  $region77: #{tpu_custom_call.1} parent=0
    _
  %s10 = ssub.s32 1, %s8
  %s11 = scalar_select 0, %s10, %s8
  $region1: #{tpu_custom_call.1} parent=0
    #allocation3 [shape = 'u8[1024]{0}', space=vmem, size = 0x400, scoped, tag = 'input window, operand 0']
    #allocation4 [shape = 's32[2]{0}', space=sflag, size = 0x8, scoped, tag = 'scoped memory for tpu_custom_call.1']
    #allocation5 [shape = 's32[2]{0}', space=sflag, size = 0x8, scoped, tag = 'scoped memory for tpu_custom_call.1']
    #allocation6 [shape = 'u8[393216]{0}', space=vmem, size = 0x60000, scoped, tag = 'input window, operand 1, single buffered']
    #allocation7 [shape = 's32[1]{0}', space=sflag, size = 0x4, scoped, tag = 'scoped memory for tpu_custom_call.1']
    #allocation8 [shape = 'u8[393216]{0}', space=vmem, size = 0x60000, scoped, tag = 'input window, operand 2, single buffered']
    #allocation9 [shape = 'u8[1024]{0}', space=vmem, size = 0x400, scoped, tag = 'output window, operand 0']
    #allocation10 [shape = 'u8[1024]{0}', space=vmem, size = 0x400, scoped, tag = 'output window, operand 1, single buffered']
    #allocation11 [shape = 's32[1]{0}', space=sflag, size = 0x4, scoped, tag = 'scoped memory for tpu_custom_call.1']
    %12 = vsyncpa [#allocation4], 0
    %s13 = scalar_lea.sflag [#allocation4], 1
    %14 = vsyncpa %s13, 0
    %15 = vsyncpa [#allocation7], 0
    %16 = vsyncpa [#allocation5], 0
    %s17 = scalar_lea.sflag [#allocation5], 1
    %18 = vsyncpa %s17, 0
    %19 = vsyncpa [#allocation11], 0
    loop: start=0, step=1, limit=8
    $region2: #{tpu_custom_call.1} parent=1 // loop_pre_header
      _
    $region3: #{tpu_custom_call.1} parent=1 // loop_header
      %s21 = sphi 0, %s25
      %p22 = scmp.ge.s32.totalorder %s21, 8
      %s31 = sphi 0, %s33
      %s34 = sphi 0, %s31
      %s35 = sphi 0, %s34
      %s51 = sphi 0, %s35
      %s55 = sphi 0, %s55
      %s57 = sphi 0, %s55
      %s58 = sphi 0, %s57
      %s72 = sphi 0, %s58
      %s76 = sphi 0, %s76
      %s78 = sphi 0, %s76
      %s79 = sphi 0, %s78
      %s93 = sphi 0, %s79
      %s97 = sphi 0, %s97
      %s99 = sphi 0, %s97
      %s100 = sphi 0, %s99
      %s114 = sphi 0, %s100
      %s118 = sphi 0, %s118
      %s120 = sphi 0, %s118
      %s121 = sphi 0, %s120
      %s135 = sphi 0, %s121
      %s141 = sphi 0, %s143
      %s144 = sphi 0, %s141
      %s145 = sphi 0, %s144
      %s161 = sphi 0, %s145
      %s165 = sphi 0, %s165
      %s167 = sphi 0, %s165
      %s168 = sphi 0, %s167
      %s182 = sphi 0, %s168
    $region4: #{tpu_custom_call.1} parent=1 // loop_header_branch
      %24 = sbr.rel (%p22) target = $region8
    $region5: #{tpu_custom_call.1} parent=1 // loop_body
      %s26 = ssub.s32 %s21, 1
      %s27 = ssub.s32 %s21, 2
      %s28 = sadd.s32 %s21, 1
      %s29 = ssub.s32 %s21, %s28
      %p30 = scmp.eq.s32.totalorder %s29, 0
      %s32 = sadd.s32 %s31, 1
      %s33 = scalar_select %p30, %s31, %s32
      %p36 = pneg %p30
      %p37 = scmp.eq.s32.totalorder %s21, 5
      %p38 = por %p36, %p37
      %p39 = scmp.ne.s32.totalorder %s31, %s34
      %p40 = scmp.eq.s32.totalorder %s21, 0
      %p41 = por %p39, %p40
      %p42 = scmp.ne.s32.totalorder %s31, %s34
      %p43 = scmp.eq.s32.totalorder %s26, 5
      %p44 = por %p42, %p43
      %p45 = scmp.ne.s32.totalorder %s34, %s35
      %p46 = scmp.eq.s32.totalorder %s26, 0
      %p47 = por %p45, %p46
      %p48 = scmp.ne.s32.totalorder %s34, %s35
      %p49 = scmp.eq.s32.totalorder %s27, 5
      %p50 = por %p48, %p49
      %p52 = scmp.ne.s32.totalorder %s35, %s51
      %p53 = scmp.eq.s32.totalorder %s27, 0
      %p54 = por %p52, %p53
      %s56 = sadd.s32 %s55, 1
      %p59 = scmp.eq.s32.totalorder %s21, 5
      %p60 = scmp.ne.s32.totalorder %s55, %s57
      %p61 = scmp.eq.s32.totalorder %s21, 0
      %p62 = por %p60, %p61
      %p63 = scmp.ne.s32.totalorder %s55, %s57
      %p64 = scmp.eq.s32.totalorder %s26, 5
      %p65 = por %p63, %p64
      %p66 = scmp.ne.s32.totalorder %s57, %s58
      %p67 = scmp.eq.s32.totalorder %s26, 0
      %p68 = por %p66, %p67
      %p69 = scmp.ne.s32.totalorder %s57, %s58
      %p70 = scmp.eq.s32.totalorder %s27, 5
      %p71 = por %p69, %p70
      %p73 = scmp.ne.s32.totalorder %s58, %s72
      %p74 = scmp.eq.s32.totalorder %s27, 0
      %p75 = por %p73, %p74
      %s77 = sadd.s32 %s76, 1
      %p80 = scmp.eq.s32.totalorder %s21, 5
      %p81 = scmp.ne.s32.totalorder %s76, %s78
      %p82 = scmp.eq.s32.totalorder %s21, 0
      %p83 = por %p81, %p82
      %p84 = scmp.ne.s32.totalorder %s76, %s78
      %p85 = scmp.eq.s32.totalorder %s26, 5
      %p86 = por %p84, %p85
      %p87 = scmp.ne.s32.totalorder %s78, %s79
      %p88 = scmp.eq.s32.totalorder %s26, 0
      %p89 = por %p87, %p88
      %p90 = scmp.ne.s32.totalorder %s78, %s79
      %p91 = scmp.eq.s32.totalorder %s27, 5
      %p92 = por %p90, %p91
      %p94 = scmp.ne.s32.totalorder %s79, %s93
      %p95 = scmp.eq.s32.totalorder %s27, 0
      %p96 = por %p94, %p95
      %s98 = sadd.s32 %s97, 1
      %p101 = scmp.eq.s32.totalorder %s21, 5
      %p102 = scmp.ne.s32.totalorder %s97, %s99
      %p103 = scmp.eq.s32.totalorder %s21, 0
      %p104 = por %p102, %p103
      %p105 = scmp.ne.s32.totalorder %s97, %s99
      %p106 = scmp.eq.s32.totalorder %s26, 5
      %p107 = por %p105, %p106
      %p108 = scmp.ne.s32.totalorder %s99, %s100
      %p109 = scmp.eq.s32.totalorder %s26, 0
      %p110 = por %p108, %p109
      %p111 = scmp.ne.s32.totalorder %s99, %s100
      %p112 = scmp.eq.s32.totalorder %s27, 5
      %p113 = por %p111, %p112
      %p115 = scmp.ne.s32.totalorder %s100, %s114
      %p116 = scmp.eq.s32.totalorder %s27, 0
      %p117 = por %p115, %p116
      %s119 = sadd.s32 %s118, 1
      %p122 = scmp.eq.s32.totalorder %s21, 5
      %p123 = scmp.ne.s32.totalorder %s118, %s120
      %p124 = scmp.eq.s32.totalorder %s21, 0
      %p125 = por %p123, %p124
      %p126 = scmp.ne.s32.totalorder %s118, %s120
      %p127 = scmp.eq.s32.totalorder %s26, 5
      %p128 = por %p126, %p127
      %p129 = scmp.ne.s32.totalorder %s120, %s121
      %p130 = scmp.eq.s32.totalorder %s26, 0
      %p131 = por %p129, %p130
      %p132 = scmp.ne.s32.totalorder %s120, %s121
      %p133 = scmp.eq.s32.totalorder %s27, 5
      %p134 = por %p132, %p133
      %p136 = scmp.ne.s32.totalorder %s121, %s135
      %p137 = scmp.eq.s32.totalorder %s27, 0
      %p138 = por %p136, %p137
      %s139 = ssub.s32 %s21, %s28
      %p140 = scmp.eq.s32.totalorder %s139, 0
      %s142 = sadd.s32 %s141, 1
      %s143 = scalar_select %p140, %s141, %s142
      %p146 = pneg %p140
      %p147 = scmp.eq.s32.totalorder %s21, 5
      %p148 = por %p146, %p147
      %p149 = scmp.ne.s32.totalorder %s141, %s144
      %p150 = scmp.eq.s32.totalorder %s21, 0
      %p151 = por %p149, %p150
      %p152 = scmp.ne.s32.totalorder %s141, %s144
      %p153 = scmp.eq.s32.totalorder %s26, 5
      %p154 = por %p152, %p153
      %p155 = scmp.ne.s32.totalorder %s144, %s145
      %p156 = scmp.eq.s32.totalorder %s26, 0
      %p157 = por %p155, %p156
      %p158 = scmp.ne.s32.totalorder %s144, %s145
      %p159 = scmp.eq.s32.totalorder %s27, 5
      %p160 = por %p158, %p159
      %p162 = scmp.ne.s32.totalorder %s145, %s161
      %p163 = scmp.eq.s32.totalorder %s27, 0
      %p164 = por %p162, %p163
      %s166 = sadd.s32 %s165, 1
      %p169 = scmp.eq.s32.totalorder %s21, 5
      %p170 = scmp.ne.s32.totalorder %s165, %s167
      %p171 = scmp.eq.s32.totalorder %s21, 0
      %p172 = por %p170, %p171
      %p173 = scmp.ne.s32.totalorder %s165, %s167
      %p174 = scmp.eq.s32.totalorder %s26, 5
      %p175 = por %p173, %p174
      %p176 = scmp.ne.s32.totalorder %s167, %s168
      %p177 = scmp.eq.s32.totalorder %s26, 0
      %p178 = por %p176, %p177
      %p179 = scmp.ne.s32.totalorder %s167, %s168
      %p180 = scmp.eq.s32.totalorder %s27, 5
      %p181 = por %p179, %p180
      %p183 = scmp.ne.s32.totalorder %s168, %s182
      %p184 = scmp.eq.s32.totalorder %s27, 0
      %p185 = por %p183, %p184
      %p186 = scmp.le.s32.totalorder 1, %s21
      %p187 = scmp.lt.s32.totalorder %s21, 7
      %p188 = pnand %p186, %p187
      %p189 = pneg %p188
      // Predicated region
      $region9: #{tpu_custom_call.1} parent=5 // pred_check
        _
      $region10: #{tpu_custom_call.1} parent=5 // pred_check_branch
        %191 = sbr.rel (%p188) target = $region12
      $region11: #{tpu_custom_call.1} parent=5 // pred_region
        %s192 = ssub.s32 %s21, 1
        // Predicated region
        $region13: #{tpu_custom_call.1} parent=11 // pred_check
          %p193 = pneg %p68
        $region14: #{tpu_custom_call.1} parent=11 // pred_check_branch
          %195 = sbr.rel (%p193) target = $region16
        $region15: #{tpu_custom_call.1} parent=11 // pred_region
          %s197 = ssub.s32 12288, 12288
          %198 = vsyncadd [#allocation7], %s197
          %s199 = sshll.u32 [#allocation6], 4
          %s200 = int_to_ptr.vmem [resolvable:$true] %s199
          %205 = dma.hbm_to_vmem [thread:$0]  %s1, 12288, %s200, [#allocation7], 128, 128, 8
        $region16: #{tpu_custom_call.1} parent=11 // pred_fallthru
          _
        // Predicated region
        $region17: #{tpu_custom_call.1} parent=11 // pred_check
          %p206 = pneg %p89
        $region18: #{tpu_custom_call.1} parent=11 // pred_check_branch
          %208 = sbr.rel (%p206) target = $region20
        $region19: #{tpu_custom_call.1} parent=11 // pred_region
          %s210 = ssub.s32 12288, 12288
          %211 = vsyncadd [#allocation7], %s210
          %s212 = sshll.u32 [#allocation8], 4
          %s213 = int_to_ptr.vmem [resolvable:$true] %s212
          %218 = dma.hbm_to_vmem [thread:$0]  %s2, 12288, %s213, [#allocation7], 128, 128, 8
        $region20: #{tpu_custom_call.1} parent=11 // pred_fallthru
          _
        // Predicated region
        $region21: #{tpu_custom_call.1} parent=11 // pred_check
          %p219 = pneg %p110
        $region22: #{tpu_custom_call.1} parent=11 // pred_check_branch
          %221 = sbr.rel (%p219) target = $region24
        $region23: #{tpu_custom_call.1} parent=11 // pred_region
          _
        $region24: #{tpu_custom_call.1} parent=11 // pred_fallthru
          _
        // Predicated region
        $region25: #{tpu_custom_call.1} parent=11 // pred_check
          %p222 = pneg %p131
        $region26: #{tpu_custom_call.1} parent=11 // pred_check_branch
          %224 = sbr.rel (%p222) target = $region28
        $region27: #{tpu_custom_call.1} parent=11 // pred_region
          _
        $region28: #{tpu_custom_call.1} parent=11 // pred_fallthru
          _
      $region12: #{tpu_custom_call.1} parent=5 // pred_fallthru
        _
      %p225 = scmp.lt.s32.totalorder %s21, 6
      // Predicated region
      $region29: #{tpu_custom_call.1} parent=5 // pred_check
        %p226 = pneg %p225
      $region30: #{tpu_custom_call.1} parent=5 // pred_check_branch
        %228 = sbr.rel (%p226) target = $region32
      $region31: #{tpu_custom_call.1} parent=5 // pred_region
        // Predicated region
        $region33: #{tpu_custom_call.1} parent=31 // pred_check
          %p229 = pneg %p41
        $region34: #{tpu_custom_call.1} parent=31 // pred_check_branch
          %231 = sbr.rel (%p229) target = $region36
        $region35: #{tpu_custom_call.1} parent=31 // pred_region
          %s232 = sand.u32 %s31, 1
          %s233 = scalar_lea.sflag [#allocation4], %s232
          %s234 = sand.u32 %s31, 1
          %s235 = scalar_lea.vmem [#allocation3], %s234
          %s237 = ssub.s32 16, 16
          %238 = vsyncadd %s233, %s237
          %s239 = smul.addr %s21, 16
          %s240 = scalar_lea.hbm %s0, %s239
          %s242 = sshll.u32 %s235, 4
          %s243 = int_to_ptr.vmem [resolvable:$true] %s242
          %245 = dma.hbm_to_vmem [thread:$0]  %s240, 16, %s243, %s233
        $region36: #{tpu_custom_call.1} parent=31 // pred_fallthru
          _
      $region32: #{tpu_custom_call.1} parent=5 // pred_fallthru
        _
      %p246 = scmp.le.s32.totalorder 1, %s21
      %p247 = scmp.lt.s32.totalorder %s21, 7
      %p248 = pnand %p246, %p247
      %p249 = pneg %p248
      // Predicated region
      $region37: #{tpu_custom_call.1} parent=5 // pred_check
        _
      $region38: #{tpu_custom_call.1} parent=5 // pred_check_branch
        %251 = sbr.rel (%p248) target = $region40
      $region39: #{tpu_custom_call.1} parent=5 // pred_region
        %s252 = ssub.s32 %s21, 1
        %s253 = sand.u32 %s34, 1
        %s254 = scalar_lea.sflag [#allocation4], %s253
        %s255 = sand.u32 %s34, 1
        %s256 = scalar_lea.vmem [#allocation3], %s255
        // Predicated region
        $region41: #{tpu_custom_call.1} parent=39 // pred_check
          %p257 = pneg %p47
        $region42: #{tpu_custom_call.1} parent=39 // pred_check_branch
          %259 = sbr.rel (%p257) target = $region44
        $region43: #{tpu_custom_call.1} parent=39 // pred_region
          %260 = dma.done %s254, 16
        $region44: #{tpu_custom_call.1} parent=39 // pred_fallthru
          _
        // Predicated region
        $region45: #{tpu_custom_call.1} parent=39 // pred_check
          %p261 = pneg %p68
        $region46: #{tpu_custom_call.1} parent=39 // pred_check_branch
          %263 = sbr.rel (%p261) target = $region48
        $region47: #{tpu_custom_call.1} parent=39 // pred_region
          %264 = dma.done [#allocation7], 12288
        $region48: #{tpu_custom_call.1} parent=39 // pred_fallthru
          _
        // Predicated region
        $region49: #{tpu_custom_call.1} parent=39 // pred_check
          %p265 = pneg %p89
        $region50: #{tpu_custom_call.1} parent=39 // pred_check_branch
          %267 = sbr.rel (%p265) target = $region52
        $region51: #{tpu_custom_call.1} parent=39 // pred_region
          %268 = dma.done [#allocation7], 12288
        $region52: #{tpu_custom_call.1} parent=39 // pred_fallthru
          _
        %s269 = sand.u32 %s34, 1
        %s270 = scalar_lea.sflag [#allocation4], %s269
        %s271 = sand.u32 %s34, 1
        %s272 = scalar_lea.vmem [#allocation3], %s271
        %p273 = pneg %p47
        %p274 = pneg %p44
        %p275 = pneg %p68
        %p276 = pneg %p65
        %p277 = pneg %p89
        %p278 = pneg %p86
        %p279 = pneg %p110
        %p280 = pneg %p107
        %p281 = pneg %p131
        %p282 = pneg %p128
        %p283 = pneg %p157
        %p284 = pneg %p154
        %s285 = sand.u32 %s144, 1
        %s286 = scalar_lea.sflag [#allocation5], %s285
        %s287 = sand.u32 %s144, 1
        %s288 = scalar_lea.vmem [#allocation9], %s287
        %p289 = pneg %p178
        %p290 = pneg %p175
        %p291 = scmp.eq.s32.totalorder %s26, 0
        // Predicated region
        $region53: #{tpu_custom_call.1} parent=39 // pred_check
          %p292 = pneg %p291
        $region54: #{tpu_custom_call.1} parent=39 // pred_check_branch
          %294 = sbr.rel (%p292) target = $region56
        $region55: #{tpu_custom_call.1} parent=39 // pred_region
          %295 = vst [vmem:[#allocation2] sm:$0x1] 0.0
          %296 = vst [vmem:[#allocation2 + $0x1] sm:$0x1] 0.0
        $region56: #{tpu_custom_call.1} parent=39 // pred_fallthru
          _
        %v297 = vld [vmem:[%s256] sm:$0x1]
        %v298 = vld [vmem:[#allocation2] sm:$0x1]
        %v299 = vld [vmem:[#allocation6] sm:$0xff]
        %v300 = vld [vmem:[#allocation6 + $0x8] sm:$0xff]
        %v301 = vld [vmem:[#allocation6 + $0x10] sm:$0xff]
        %v302 = vld [vmem:[#allocation6 + $0x18] sm:$0xff]
        %v303 = vld [vmem:[#allocation6 + $0x20] sm:$0xff]
        %v304 = vld [vmem:[#allocation6 + $0x28] sm:$0xff]
        %v305 = vld [vmem:[#allocation6 + $0x30] sm:$0xff]
        %v306 = vld [vmem:[#allocation6 + $0x38] sm:$0xff]
        %v307 = vld [vmem:[#allocation6 + $0x40] sm:$0xff]
        %v308 = vld [vmem:[#allocation6 + $0x48] sm:$0xff]
        %v309 = vld [vmem:[#allocation6 + $0x50] sm:$0xff]
        %v310 = vld [vmem:[#allocation6 + $0x58] sm:$0xff]
        %v311 = vld [vmem:[#allocation6 + $0x60] sm:$0xff]
        %v312 = vld [vmem:[#allocation6 + $0x68] sm:$0xff]
        %v313 = vld [vmem:[#allocation6 + $0x70] sm:$0xff]
        %v314 = vld [vmem:[#allocation6 + $0x78] sm:$0xff]
        %v315 = vld [vmem:[%s3] sm:$0x1]
        %316 = vmatprep.subr.mxu0 0.0
        %317 = vmatpush1.msra.mxu0 %v299
        %318 = vmatprep.subr.mxu0 0.0
        %319 = vmatpush1.msra.mxu0 %v300
        %320 = vmatprep.subr.mxu0 0.0
        %321 = vmatpush1.msra.mxu0 %v301
        %322 = vmatprep.subr.mxu0 0.0
        %323 = vmatpush1.msra.mxu0 %v302
        %324 = vmatprep.subr.mxu0 0.0
        %325 = vmatpush1.msra.mxu0 %v303
        %326 = vmatprep.subr.mxu0 0.0
        %327 = vmatpush1.msra.mxu0 %v304
        %328 = vmatprep.subr.mxu0 0.0
        %329 = vmatpush1.msra.mxu0 %v305
        %330 = vmatprep.subr.mxu0 0.0
        %331 = vmatpush1.msra.mxu0 %v306
        %332 = vmatprep.subr.mxu0 0.0
        %333 = vmatpush1.msra.mxu0 %v307
        %334 = vmatprep.subr.mxu0 0.0
        %335 = vmatpush1.msra.mxu0 %v308
        %336 = vmatprep.subr.mxu0 0.0
        %337 = vmatpush1.msra.mxu0 %v309
        %338 = vmatprep.subr.mxu0 0.0
        %339 = vmatpush1.msra.mxu0 %v310
        %340 = vmatprep.subr.mxu0 0.0
        %341 = vmatpush1.msra.mxu0 %v311
        %342 = vmatprep.subr.mxu0 0.0
        %343 = vmatpush1.msra.mxu0 %v312
        %344 = vmatprep.subr.mxu0 0.0
        %345 = vmatpush1.msra.mxu0 %v313
        %346 = vmatprep.subr.mxu0 0.0
        %347 = vmatpush1.msra.mxu0 %v314
        %348 = vmatprep.subr.mxu0 0.0
        %349 = vmatpush1.msra.mxu0 0.0
        %350 = vmatprep.subr.mxu0 0.0
        %351 = vmatpush1.msra.mxu0 0.0
        %352 = vmatprep.subr.mxu0 0.0
        %353 = vmatpush1.msra.mxu0 0.0
        %354 = vmatprep.subr.mxu0 0.0
        %355 = vmatpush1.msra.mxu0 0.0
        %356 = vmatprep.subr.mxu0 0.0
        %357 = vmatpush1.msra.mxu0 0.0
        %358 = vmatprep.subr.mxu0 0.0
        %359 = vmatpush1.msra.mxu0 0.0
        %360 = vmatprep.subr.mxu0 0.0
        %361 = vmatpush1.msra.mxu0 0.0
        %362 = vmatprep.subr.mxu0 0.0
        %363 = vmatpush1.msra.mxu0 0.0
        %364 = vmatprep.subr.mxu0 0.0
        %365 = vmatpush1.msra.mxu0 0.0
        %366 = vmatprep.subr.mxu0 0.0
        %367 = vmatpush1.msra.mxu0 0.0
        %368 = vmatprep.subr.mxu0 0.0
        %369 = vmatpush1.msra.mxu0 0.0
        %370 = vmatprep.subr.mxu0 0.0
        %371 = vmatpush1.msra.mxu0 0.0
        %372 = vmatprep.subr.mxu0 0.0
        %373 = vmatpush1.msra.mxu0 0.0
        %374 = vmatprep.subr.mxu0 0.0
        %375 = vmatpush1.msra.mxu0 0.0
        %376 = vmatprep.subr.mxu0 0.0
        %377 = vmatpush1.msra.mxu0 0.0
        %378 = vmatprep.subr.mxu0 0.0
        %379 = vmatpush1.msra.mxu0 0.0
        %380 = vmatprep.mubr.f32.mxu0 0.0
        %381 = vmatmul.mubr.f32.gmra.mrb[0].mxu0 %v297
        %v382 = vpop.f32.mrb[0].mxu0
        %v383 = vadd.f32 %v315, %v382
        %v384 = vpop.f32.mrb[0].mxu0
        %385 = vdwg.mxu0
        %s386 = scalar_lea.vmem [#allocation6], 128
        %v387 = vld [vmem:[%s386] sm:$0xff]
        %v388 = vld [vmem:[%s386 + $0x8] sm:$0xff]
        %v389 = vld [vmem:[%s386 + $0x10] sm:$0xff]
        %v390 = vld [vmem:[%s386 + $0x18] sm:$0xff]
        %v391 = vld [vmem:[%s386 + $0x20] sm:$0xff]
        %v392 = vld [vmem:[%s386 + $0x28] sm:$0xff]
        %v393 = vld [vmem:[%s386 + $0x30] sm:$0xff]
        %v394 = vld [vmem:[%s386 + $0x38] sm:$0xff]
        %v395 = vld [vmem:[%s386 + $0x40] sm:$0xff]
        %v396 = vld [vmem:[%s386 + $0x48] sm:$0xff]
        %v397 = vld [vmem:[%s386 + $0x50] sm:$0xff]
        %v398 = vld [vmem:[%s386 + $0x58] sm:$0xff]
        %v399 = vld [vmem:[%s386 + $0x60] sm:$0xff]
        %v400 = vld [vmem:[%s386 + $0x68] sm:$0xff]
        %v401 = vld [vmem:[%s386 + $0x70] sm:$0xff]
        %v402 = vld [vmem:[%s386 + $0x78] sm:$0xff]
        %s403 = scalar_lea.vmem %s3, 1
        %v404 = vld [vmem:[%s403] sm:$0x1]
        %405 = vmatprep.subr.mxu0 0.0
        %406 = vmatpush1.msra.mxu0 %v387
        %407 = vmatprep.subr.mxu0 0.0
        %408 = vmatpush1.msra.mxu0 %v388
        %409 = vmatprep.subr.mxu0 0.0
        %410 = vmatpush1.msra.mxu0 %v389
        %411 = vmatprep.subr.mxu0 0.0
        %412 = vmatpush1.msra.mxu0 %v390
        %413 = vmatprep.subr.mxu0 0.0
        %414 = vmatpush1.msra.mxu0 %v391
        %415 = vmatprep.subr.mxu0 0.0
        %416 = vmatpush1.msra.mxu0 %v392
        %417 = vmatprep.subr.mxu0 0.0
        %418 = vmatpush1.msra.mxu0 %v393
        %419 = vmatprep.subr.mxu0 0.0
        %420 = vmatpush1.msra.mxu0 %v394
        %421 = vmatprep.subr.mxu0 0.0
        %422 = vmatpush1.msra.mxu0 %v395
        %423 = vmatprep.subr.mxu0 0.0
        %424 = vmatpush1.msra.mxu0 %v396
        %425 = vmatprep.subr.mxu0 0.0
        %426 = vmatpush1.msra.mxu0 %v397
        %427 = vmatprep.subr.mxu0 0.0
        %428 = vmatpush1.msra.mxu0 %v398
        %429 = vmatprep.subr.mxu0 0.0
        %430 = vmatpush1.msra.mxu0 %v399
        %431 = vmatprep.subr.mxu0 0.0
        %432 = vmatpush1.msra.mxu0 %v400
        %433 = vmatprep.subr.mxu0 0.0
        %434 = vmatpush1.msra.mxu0 %v401
        %435 = vmatprep.subr.mxu0 0.0
        %436 = vmatpush1.msra.mxu0 %v402
        %437 = vmatprep.subr.mxu0 0.0
        %438 = vmatpush1.msra.mxu0 0.0
        %439 = vmatprep.subr.mxu0 0.0
        %440 = vmatpush1.msra.mxu0 0.0
        %441 = vmatprep.subr.mxu0 0.0
        %442 = vmatpush1.msra.mxu0 0.0
        %443 = vmatprep.subr.mxu0 0.0
        %444 = vmatpush1.msra.mxu0 0.0
        %445 = vmatprep.subr.mxu0 0.0
        %446 = vmatpush1.msra.mxu0 0.0
        %447 = vmatprep.subr.mxu0 0.0
        %448 = vmatpush1.msra.mxu0 0.0
        %449 = vmatprep.subr.mxu0 0.0
        %450 = vmatpush1.msra.mxu0 0.0
        %451 = vmatprep.subr.mxu0 0.0
        %452 = vmatpush1.msra.mxu0 0.0
        %453 = vmatprep.subr.mxu0 0.0
        %454 = vmatpush1.msra.mxu0 0.0
        %455 = vmatprep.subr.mxu0 0.0
        %456 = vmatpush1.msra.mxu0 0.0
        %457 = vmatprep.subr.mxu0 0.0
        %458 = vmatpush1.msra.mxu0 0.0
        %459 = vmatprep.subr.mxu0 0.0
        %460 = vmatpush1.msra.mxu0 0.0
        %461 = vmatprep.subr.mxu0 0.0
        %462 = vmatpush1.msra.mxu0 0.0
        %463 = vmatprep.subr.mxu0 0.0
        %464 = vmatpush1.msra.mxu0 0.0
        %465 = vmatprep.subr.mxu0 0.0
        %466 = vmatpush1.msra.mxu0 0.0
        %467 = vmatprep.subr.mxu0 0.0
        %468 = vmatpush1.msra.mxu0 0.0
        %469 = vmatprep.mubr.f32.mxu0 0.0
        %470 = vmatmul.mubr.f32.gmra.mrb[0].mxu0 %v297
        %v471 = vpop.f32.mrb[0].mxu0
        %v472 = vadd.f32 %v404, %v471
        %v473 = vpop.f32.mrb[0].mxu0
        %474 = vdwg.mxu0
        %s475 = scalar_lea.vmem [#allocation6], 256
        %v476 = vld [vmem:[%s475] sm:$0xff]
        %v477 = vld [vmem:[%s475 + $0x8] sm:$0xff]
        %v478 = vld [vmem:[%s475 + $0x10] sm:$0xff]
        %v479 = vld [vmem:[%s475 + $0x18] sm:$0xff]
        %v480 = vld [vmem:[%s475 + $0x20] sm:$0xff]
        %v481 = vld [vmem:[%s475 + $0x28] sm:$0xff]
        %v482 = vld [vmem:[%s475 + $0x30] sm:$0xff]
        %v483 = vld [vmem:[%s475 + $0x38] sm:$0xff]
        %v484 = vld [vmem:[%s475 + $0x40] sm:$0xff]
        %v485 = vld [vmem:[%s475 + $0x48] sm:$0xff]
        %v486 = vld [vmem:[%s475 + $0x50] sm:$0xff]
        %v487 = vld [vmem:[%s475 + $0x58] sm:$0xff]
        %v488 = vld [vmem:[%s475 + $0x60] sm:$0xff]
        %v489 = vld [vmem:[%s475 + $0x68] sm:$0xff]
        %v490 = vld [vmem:[%s475 + $0x70] sm:$0xff]
        %v491 = vld [vmem:[%s475 + $0x78] sm:$0xff]
        %s492 = scalar_lea.vmem %s3, 2
        %v493 = vld [vmem:[%s492] sm:$0x1]
        %494 = vmatprep.subr.mxu0 0.0
        %495 = vmatpush1.msra.mxu0 %v476
        %496 = vmatprep.subr.mxu0 0.0
        %497 = vmatpush1.msra.mxu0 %v477
        %498 = vmatprep.subr.mxu0 0.0
        %499 = vmatpush1.msra.mxu0 %v478
        %500 = vmatprep.subr.mxu0 0.0
        %501 = vmatpush1.msra.mxu0 %v479
        %502 = vmatprep.subr.mxu0 0.0
        %503 = vmatpush1.msra.mxu0 %v480
        %504 = vmatprep.subr.mxu0 0.0
        %505 = vmatpush1.msra.mxu0 %v481
        %506 = vmatprep.subr.mxu0 0.0
        %507 = vmatpush1.msra.mxu0 %v482
        %508 = vmatprep.subr.mxu0 0.0
        %509 = vmatpush1.msra.mxu0 %v483
        %510 = vmatprep.subr.mxu0 0.0
        %511 = vmatpush1.msra.mxu0 %v484
        %512 = vmatprep.subr.mxu0 0.0
        %513 = vmatpush1.msra.mxu0 %v485
        %514 = vmatprep.subr.mxu0 0.0
        %515 = vmatpush1.msra.mxu0 %v486
        %516 = vmatprep.subr.mxu0 0.0
        %517 = vmatpush1.msra.mxu0 %v487
        %518 = vmatprep.subr.mxu0 0.0
        %519 = vmatpush1.msra.mxu0 %v488
        %520 = vmatprep.subr.mxu0 0.0
        %521 = vmatpush1.msra.mxu0 %v489
        %522 = vmatprep.subr.mxu0 0.0
        %523 = vmatpush1.msra.mxu0 %v490
        %524 = vmatprep.subr.mxu0 0.0
        %525 = vmatpush1.msra.mxu0 %v491
        %526 = vmatprep.subr.mxu0 0.0
        %527 = vmatpush1.msra.mxu0 0.0
        %528 = vmatprep.subr.mxu0 0.0
        %529 = vmatpush1.msra.mxu0 0.0
        %530 = vmatprep.subr.mxu0 0.0
        %531 = vmatpush1.msra.mxu0 0.0
        %532 = vmatprep.subr.mxu0 0.0
        %533 = vmatpush1.msra.mxu0 0.0
        %534 = vmatprep.subr.mxu0 0.0
        %535 = vmatpush1.msra.mxu0 0.0
        %536 = vmatprep.subr.mxu0 0.0
        %537 = vmatpush1.msra.mxu0 0.0
        %538 = vmatprep.subr.mxu0 0.0
        %539 = vmatpush1.msra.mxu0 0.0
        %540 = vmatprep.subr.mxu0 0.0
        %541 = vmatpush1.msra.mxu0 0.0
        %542 = vmatprep.subr.mxu0 0.0
        %543 = vmatpush1.msra.mxu0 0.0
        %544 = vmatprep.subr.mxu0 0.0
        %545 = vmatpush1.msra.mxu0 0.0
        %546 = vmatprep.subr.mxu0 0.0
        %547 = vmatpush1.msra.mxu0 0.0
        %548 = vmatprep.subr.mxu0 0.0
        %549 = vmatpush1.msra.mxu0 0.0
        %550 = vmatprep.subr.mxu0 0.0
        %551 = vmatpush1.msra.mxu0 0.0
        %552 = vmatprep.subr.mxu0 0.0
        %553 = vmatpush1.msra.mxu0 0.0
        %554 = vmatprep.subr.mxu0 0.0
        %555 = vmatpush1.msra.mxu0 0.0
        %556 = vmatprep.subr.mxu0 0.0
        %557 = vmatpush1.msra.mxu0 0.0
        %558 = vmatprep.mubr.f32.mxu0 0.0
        %559 = vmatmul.mubr.f32.gmra.mrb[0].mxu0 %v297
        %v560 = vpop.f32.mrb[0].mxu0
        %v561 = vadd.f32 %v493, %v560
        %v562 = vpop.f32.mrb[0].mxu0
        %563 = vdwg.mxu0
        %v564 = vld [vmem:[#allocation8] sm:$0xff]
        %v565 = vld [vmem:[#allocation8 + $0x8] sm:$0xff]
        %v566 = vld [vmem:[#allocation8 + $0x10] sm:$0xff]
        %v567 = vld [vmem:[#allocation8 + $0x18] sm:$0xff]
        %v568 = vld [vmem:[#allocation8 + $0x20] sm:$0xff]
        %v569 = vld [vmem:[#allocation8 + $0x28] sm:$0xff]
        %v570 = vld [vmem:[#allocation8 + $0x30] sm:$0xff]
        %v571 = vld [vmem:[#allocation8 + $0x38] sm:$0xff]
        %v572 = vld [vmem:[#allocation8 + $0x40] sm:$0xff]
        %v573 = vld [vmem:[#allocation8 + $0x48] sm:$0xff]
        %v574 = vld [vmem:[#allocation8 + $0x50] sm:$0xff]
        %v575 = vld [vmem:[#allocation8 + $0x58] sm:$0xff]
        %v576 = vld [vmem:[#allocation8 + $0x60] sm:$0xff]
        %v577 = vld [vmem:[#allocation8 + $0x68] sm:$0xff]
        %v578 = vld [vmem:[#allocation8 + $0x70] sm:$0xff]
        %v579 = vld [vmem:[#allocation8 + $0x78] sm:$0xff]
        %v580 = vld [vmem:[%s4] sm:$0x1]
        %581 = vmatprep.subr.mxu0 0.0
        %582 = vmatpush1.msra.mxu0 %v564
        %583 = vmatprep.subr.mxu0 0.0
        %584 = vmatpush1.msra.mxu0 %v565
        %585 = vmatprep.subr.mxu0 0.0
        %586 = vmatpush1.msra.mxu0 %v566
        %587 = vmatprep.subr.mxu0 0.0
        %588 = vmatpush1.msra.mxu0 %v567
        %589 = vmatprep.subr.mxu0 0.0
        %590 = vmatpush1.msra.mxu0 %v568
        %591 = vmatprep.subr.mxu0 0.0
        %592 = vmatpush1.msra.mxu0 %v569
        %593 = vmatprep.subr.mxu0 0.0
        %594 = vmatpush1.msra.mxu0 %v570
        %595 = vmatprep.subr.mxu0 0.0
        %596 = vmatpush1.msra.mxu0 %v571
        %597 = vmatprep.subr.mxu0 0.0
        %598 = vmatpush1.msra.mxu0 %v572
        %599 = vmatprep.subr.mxu0 0.0
        %600 = vmatpush1.msra.mxu0 %v573
        %601 = vmatprep.subr.mxu0 0.0
        %602 = vmatpush1.msra.mxu0 %v574
        %603 = vmatprep.subr.mxu0 0.0
        %604 = vmatpush1.msra.mxu0 %v575
        %605 = vmatprep.subr.mxu0 0.0
        %606 = vmatpush1.msra.mxu0 %v576
        %607 = vmatprep.subr.mxu0 0.0
        %608 = vmatpush1.msra.mxu0 %v577
        %609 = vmatprep.subr.mxu0 0.0
        %610 = vmatpush1.msra.mxu0 %v578
        %611 = vmatprep.subr.mxu0 0.0
        %612 = vmatpush1.msra.mxu0 %v579
        %613 = vmatprep.subr.mxu0 0.0
        %614 = vmatpush1.msra.mxu0 0.0
        %615 = vmatprep.subr.mxu0 0.0
        %616 = vmatpush1.msra.mxu0 0.0
        %617 = vmatprep.subr.mxu0 0.0
        %618 = vmatpush1.msra.mxu0 0.0
        %619 = vmatprep.subr.mxu0 0.0
        %620 = vmatpush1.msra.mxu0 0.0
        %621 = vmatprep.subr.mxu0 0.0
        %622 = vmatpush1.msra.mxu0 0.0
        %623 = vmatprep.subr.mxu0 0.0
        %624 = vmatpush1.msra.mxu0 0.0
        %625 = vmatprep.subr.mxu0 0.0
        %626 = vmatpush1.msra.mxu0 0.0
        %627 = vmatprep.subr.mxu0 0.0
        %628 = vmatpush1.msra.mxu0 0.0
        %629 = vmatprep.subr.mxu0 0.0
        %630 = vmatpush1.msra.mxu0 0.0
        %631 = vmatprep.subr.mxu0 0.0
        %632 = vmatpush1.msra.mxu0 0.0
        %633 = vmatprep.subr.mxu0 0.0
        %634 = vmatpush1.msra.mxu0 0.0
        %635 = vmatprep.subr.mxu0 0.0
        %636 = vmatpush1.msra.mxu0 0.0
        %637 = vmatprep.subr.mxu0 0.0
        %638 = vmatpush1.msra.mxu0 0.0
        %639 = vmatprep.subr.mxu0 0.0
        %640 = vmatpush1.msra.mxu0 0.0
        %641 = vmatprep.subr.mxu0 0.0
        %642 = vmatpush1.msra.mxu0 0.0
        %643 = vmatprep.subr.mxu0 0.0
        %644 = vmatpush1.msra.mxu0 0.0
        %645 = vmatprep.mubr.f32.mxu0 0.0
        %646 = vmatmul.mubr.f32.gmra.mrb[0].mxu0 %v298
        %v647 = vpop.f32.mrb[0].mxu0
        %v648 = vadd.f32 %v580, %v647
        %v649 = vpop.f32.mrb[0].mxu0
        %650 = vdwg.mxu0
        %s651 = scalar_lea.vmem [#allocation8], 128
        %v652 = vld [vmem:[%s651] sm:$0xff]
        %v653 = vld [vmem:[%s651 + $0x8] sm:$0xff]
        %v654 = vld [vmem:[%s651 + $0x10] sm:$0xff]
        %v655 = vld [vmem:[%s651 + $0x18] sm:$0xff]
        %v656 = vld [vmem:[%s651 + $0x20] sm:$0xff]
        %v657 = vld [vmem:[%s651 + $0x28] sm:$0xff]
        %v658 = vld [vmem:[%s651 + $0x30] sm:$0xff]
        %v659 = vld [vmem:[%s651 + $0x38] sm:$0xff]
        %v660 = vld [vmem:[%s651 + $0x40] sm:$0xff]
        %v661 = vld [vmem:[%s651 + $0x48] sm:$0xff]
        %v662 = vld [vmem:[%s651 + $0x50] sm:$0xff]
        %v663 = vld [vmem:[%s651 + $0x58] sm:$0xff]
        %v664 = vld [vmem:[%s651 + $0x60] sm:$0xff]
        %v665 = vld [vmem:[%s651 + $0x68] sm:$0xff]
        %v666 = vld [vmem:[%s651 + $0x70] sm:$0xff]
        %v667 = vld [vmem:[%s651 + $0x78] sm:$0xff]
        %s668 = scalar_lea.vmem %s4, 1
        %v669 = vld [vmem:[%s668] sm:$0x1]
        %670 = vmatprep.subr.mxu0 0.0
        %671 = vmatpush1.msra.mxu0 %v652
        %672 = vmatprep.subr.mxu0 0.0
        %673 = vmatpush1.msra.mxu0 %v653
        %674 = vmatprep.subr.mxu0 0.0
        %675 = vmatpush1.msra.mxu0 %v654
        %676 = vmatprep.subr.mxu0 0.0
        %677 = vmatpush1.msra.mxu0 %v655
        %678 = vmatprep.subr.mxu0 0.0
        %679 = vmatpush1.msra.mxu0 %v656
        %680 = vmatprep.subr.mxu0 0.0
        %681 = vmatpush1.msra.mxu0 %v657
        %682 = vmatprep.subr.mxu0 0.0
        %683 = vmatpush1.msra.mxu0 %v658
        %684 = vmatprep.subr.mxu0 0.0
        %685 = vmatpush1.msra.mxu0 %v659
        %686 = vmatprep.subr.mxu0 0.0
        %687 = vmatpush1.msra.mxu0 %v660
        %688 = vmatprep.subr.mxu0 0.0
        %689 = vmatpush1.msra.mxu0 %v661
        %690 = vmatprep.subr.mxu0 0.0
        %691 = vmatpush1.msra.mxu0 %v662
        %692 = vmatprep.subr.mxu0 0.0
        %693 = vmatpush1.msra.mxu0 %v663
        %694 = vmatprep.subr.mxu0 0.0
        %695 = vmatpush1.msra.mxu0 %v664
        %696 = vmatprep.subr.mxu0 0.0
        %697 = vmatpush1.msra.mxu0 %v665
        %698 = vmatprep.subr.mxu0 0.0
        %699 = vmatpush1.msra.mxu0 %v666
        %700 = vmatprep.subr.mxu0 0.0
        %701 = vmatpush1.msra.mxu0 %v667
        %702 = vmatprep.subr.mxu0 0.0
        %703 = vmatpush1.msra.mxu0 0.0
        %704 = vmatprep.subr.mxu0 0.0
        %705 = vmatpush1.msra.mxu0 0.0
        %706 = vmatprep.subr.mxu0 0.0
        %707 = vmatpush1.msra.mxu0 0.0
        %708 = vmatprep.subr.mxu0 0.0
        %709 = vmatpush1.msra.mxu0 0.0
        %710 = vmatprep.subr.mxu0 0.0
        %711 = vmatpush1.msra.mxu0 0.0
        %712 = vmatprep.subr.mxu0 0.0
        %713 = vmatpush1.msra.mxu0 0.0
        %714 = vmatprep.subr.mxu0 0.0
        %715 = vmatpush1.msra.mxu0 0.0
        %716 = vmatprep.subr.mxu0 0.0
        %717 = vmatpush1.msra.mxu0 0.0
        %718 = vmatprep.subr.mxu0 0.0
        %719 = vmatpush1.msra.mxu0 0.0
        %720 = vmatprep.subr.mxu0 0.0
        %721 = vmatpush1.msra.mxu0 0.0
        %722 = vmatprep.subr.mxu0 0.0
        %723 = vmatpush1.msra.mxu0 0.0
        %724 = vmatprep.subr.mxu0 0.0
        %725 = vmatpush1.msra.mxu0 0.0
        %726 = vmatprep.subr.mxu0 0.0
        %727 = vmatpush1.msra.mxu0 0.0
        %728 = vmatprep.subr.mxu0 0.0
        %729 = vmatpush1.msra.mxu0 0.0
        %730 = vmatprep.subr.mxu0 0.0
        %731 = vmatpush1.msra.mxu0 0.0
        %732 = vmatprep.subr.mxu0 0.0
        %733 = vmatpush1.msra.mxu0 0.0
        %734 = vmatprep.mubr.f32.mxu0 0.0
        %735 = vmatmul.mubr.f32.gmra.mrb[0].mxu0 %v298
        %v736 = vpop.f32.mrb[0].mxu0
        %v737 = vadd.f32 %v669, %v736
        %v738 = vpop.f32.mrb[0].mxu0
        %739 = vdwg.mxu0
        %s740 = scalar_lea.vmem [#allocation8], 256
        %v741 = vld [vmem:[%s740] sm:$0xff]
        %v742 = vld [vmem:[%s740 + $0x8] sm:$0xff]
        %v743 = vld [vmem:[%s740 + $0x10] sm:$0xff]
        %v744 = vld [vmem:[%s740 + $0x18] sm:$0xff]
        %v745 = vld [vmem:[%s740 + $0x20] sm:$0xff]
        %v746 = vld [vmem:[%s740 + $0x28] sm:$0xff]
        %v747 = vld [vmem:[%s740 + $0x30] sm:$0xff]
        %v748 = vld [vmem:[%s740 + $0x38] sm:$0xff]
        %v749 = vld [vmem:[%s740 + $0x40] sm:$0xff]
        %v750 = vld [vmem:[%s740 + $0x48] sm:$0xff]
        %v751 = vld [vmem:[%s740 + $0x50] sm:$0xff]
        %v752 = vld [vmem:[%s740 + $0x58] sm:$0xff]
        %v753 = vld [vmem:[%s740 + $0x60] sm:$0xff]
        %v754 = vld [vmem:[%s740 + $0x68] sm:$0xff]
        %v755 = vld [vmem:[%s740 + $0x70] sm:$0xff]
        %v756 = vld [vmem:[%s740 + $0x78] sm:$0xff]
        %s757 = scalar_lea.vmem %s4, 2
        %v758 = vld [vmem:[%s757] sm:$0x1]
        %759 = vmatprep.subr.mxu0 0.0
        %760 = vmatpush1.msra.mxu0 %v741
        %761 = vmatprep.subr.mxu0 0.0
        %762 = vmatpush1.msra.mxu0 %v742
        %763 = vmatprep.subr.mxu0 0.0
        %764 = vmatpush1.msra.mxu0 %v743
        %765 = vmatprep.subr.mxu0 0.0
        %766 = vmatpush1.msra.mxu0 %v744
        %767 = vmatprep.subr.mxu0 0.0
        %768 = vmatpush1.msra.mxu0 %v745
        %769 = vmatprep.subr.mxu0 0.0
        %770 = vmatpush1.msra.mxu0 %v746
        %771 = vmatprep.subr.mxu0 0.0
        %772 = vmatpush1.msra.mxu0 %v747
        %773 = vmatprep.subr.mxu0 0.0
        %774 = vmatpush1.msra.mxu0 %v748
        %775 = vmatprep.subr.mxu0 0.0
        %776 = vmatpush1.msra.mxu0 %v749
        %777 = vmatprep.subr.mxu0 0.0
        %778 = vmatpush1.msra.mxu0 %v750
        %779 = vmatprep.subr.mxu0 0.0
        %780 = vmatpush1.msra.mxu0 %v751
        %781 = vmatprep.subr.mxu0 0.0
        %782 = vmatpush1.msra.mxu0 %v752
        %783 = vmatprep.subr.mxu0 0.0
        %784 = vmatpush1.msra.mxu0 %v753
        %785 = vmatprep.subr.mxu0 0.0
        %786 = vmatpush1.msra.mxu0 %v754
        %787 = vmatprep.subr.mxu0 0.0
        %788 = vmatpush1.msra.mxu0 %v755
        %789 = vmatprep.subr.mxu0 0.0
        %790 = vmatpush1.msra.mxu0 %v756
        %791 = vmatprep.subr.mxu0 0.0
        %792 = vmatpush1.msra.mxu0 0.0
        %793 = vmatprep.subr.mxu0 0.0
        %794 = vmatpush1.msra.mxu0 0.0
        %795 = vmatprep.subr.mxu0 0.0
        %796 = vmatpush1.msra.mxu0 0.0
        %797 = vmatprep.subr.mxu0 0.0
        %798 = vmatpush1.msra.mxu0 0.0
        %799 = vmatprep.subr.mxu0 0.0
        %800 = vmatpush1.msra.mxu0 0.0
        %801 = vmatprep.subr.mxu0 0.0
        %802 = vmatpush1.msra.mxu0 0.0
        %803 = vmatprep.subr.mxu0 0.0
        %804 = vmatpush1.msra.mxu0 0.0
        %805 = vmatprep.subr.mxu0 0.0
        %806 = vmatpush1.msra.mxu0 0.0
        %807 = vmatprep.subr.mxu0 0.0
        %808 = vmatpush1.msra.mxu0 0.0
        %809 = vmatprep.subr.mxu0 0.0
        %810 = vmatpush1.msra.mxu0 0.0
        %811 = vmatprep.subr.mxu0 0.0
        %812 = vmatpush1.msra.mxu0 0.0
        %813 = vmatprep.subr.mxu0 0.0
        %814 = vmatpush1.msra.mxu0 0.0
        %815 = vmatprep.subr.mxu0 0.0
        %816 = vmatpush1.msra.mxu0 0.0
        %817 = vmatprep.subr.mxu0 0.0
        %818 = vmatpush1.msra.mxu0 0.0
        %819 = vmatprep.subr.mxu0 0.0
        %820 = vmatpush1.msra.mxu0 0.0
        %821 = vmatprep.subr.mxu0 0.0
        %822 = vmatpush1.msra.mxu0 0.0
        %823 = vmatprep.mubr.f32.mxu0 0.0
        %824 = vmatmul.mubr.f32.gmra.mrb[0].mxu0 %v298
        %v825 = vpop.f32.mrb[0].mxu0
        %v826 = vadd.f32 %v758, %v825
        %v827 = vpop.f32.mrb[0].mxu0
        %828 = vdwg.mxu0
        %v829 = vadd.f32 %v383, %v648
        %v830 = vxor.u32 %v829, 2147483648
        %v831 = vmul.f32 %v830, 1.442695
        %v832 = vpow.pop %v831
        %v833 = vadd.f32 %v832, 1.0
        %v834 = vrcp.pop %v833
        %v835 = vmul.f32 1.0, %v834
        %v836 = vadd.f32 %v472, %v737
        %v837 = vxor.u32 %v836, 2147483648
        %v838 = vmul.f32 %v837, 1.442695
        %v839 = vpow.pop %v838
        %v840 = vadd.f32 %v839, 1.0
        %v841 = vrcp.pop %v840
        %v842 = vmul.f32 1.0, %v841
        %v843 = vmul.f32 %v835, %v826
        %v844 = vadd.f32 %v561, %v843
        %v845 = vtanh.pop %v844
        %v846 = vsub.f32 1.0, %v842
        %v847 = vmul.f32 %v846, %v845
        %v848 = vmul.f32 %v842, %v298
        %v849 = vadd.f32 %v847, %v848
        %850 = vst [vmem:[#allocation2] sm:$0x1] %v849
        %s851 = scalar_lea.vmem [#allocation2], 1
        %v852 = vld [vmem:[%s851] sm:$0x1]
        %s853 = scalar_lea.vmem [#allocation6], 384
        %v854 = vld [vmem:[%s853] sm:$0xff]
        %v855 = vld [vmem:[%s853 + $0x8] sm:$0xff]
        %v856 = vld [vmem:[%s853 + $0x10] sm:$0xff]
        %v857 = vld [vmem:[%s853 + $0x18] sm:$0xff]
        %v858 = vld [vmem:[%s853 + $0x20] sm:$0xff]
        %v859 = vld [vmem:[%s853 + $0x28] sm:$0xff]
        %v860 = vld [vmem:[%s853 + $0x30] sm:$0xff]
        %v861 = vld [vmem:[%s853 + $0x38] sm:$0xff]
        %v862 = vld [vmem:[%s853 + $0x40] sm:$0xff]
        %v863 = vld [vmem:[%s853 + $0x48] sm:$0xff]
        %v864 = vld [vmem:[%s853 + $0x50] sm:$0xff]
        %v865 = vld [vmem:[%s853 + $0x58] sm:$0xff]
        %v866 = vld [vmem:[%s853 + $0x60] sm:$0xff]
        %v867 = vld [vmem:[%s853 + $0x68] sm:$0xff]
        %v868 = vld [vmem:[%s853 + $0x70] sm:$0xff]
        %v869 = vld [vmem:[%s853 + $0x78] sm:$0xff]
        %s870 = scalar_lea.vmem %s3, 3
        %v871 = vld [vmem:[%s870] sm:$0x1]
        %872 = vmatprep.subr.mxu0 0.0
        %873 = vmatpush1.msra.mxu0 %v854
        %874 = vmatprep.subr.mxu0 0.0
        %875 = vmatpush1.msra.mxu0 %v855
        %876 = vmatprep.subr.mxu0 0.0
        %877 = vmatpush1.msra.mxu0 %v856
        %878 = vmatprep.subr.mxu0 0.0
        %879 = vmatpush1.msra.mxu0 %v857
        %880 = vmatprep.subr.mxu0 0.0
        %881 = vmatpush1.msra.mxu0 %v858
        %882 = vmatprep.subr.mxu0 0.0
        %883 = vmatpush1.msra.mxu0 %v859
        %884 = vmatprep.subr.mxu0 0.0
        %885 = vmatpush1.msra.mxu0 %v860
        %886 = vmatprep.subr.mxu0 0.0
        %887 = vmatpush1.msra.mxu0 %v861
        %888 = vmatprep.subr.mxu0 0.0
        %889 = vmatpush1.msra.mxu0 %v862
        %890 = vmatprep.subr.mxu0 0.0
        %891 = vmatpush1.msra.mxu0 %v863
        %892 = vmatprep.subr.mxu0 0.0
        %893 = vmatpush1.msra.mxu0 %v864
        %894 = vmatprep.subr.mxu0 0.0
        %895 = vmatpush1.msra.mxu0 %v865
        %896 = vmatprep.subr.mxu0 0.0
        %897 = vmatpush1.msra.mxu0 %v866
        %898 = vmatprep.subr.mxu0 0.0
        %899 = vmatpush1.msra.mxu0 %v867
        %900 = vmatprep.subr.mxu0 0.0
        %901 = vmatpush1.msra.mxu0 %v868
        %902 = vmatprep.subr.mxu0 0.0
        %903 = vmatpush1.msra.mxu0 %v869
        %904 = vmatprep.subr.mxu0 0.0
        %905 = vmatpush1.msra.mxu0 0.0
        %906 = vmatprep.subr.mxu0 0.0
        %907 = vmatpush1.msra.mxu0 0.0
        %908 = vmatprep.subr.mxu0 0.0
        %909 = vmatpush1.msra.mxu0 0.0
        %910 = vmatprep.subr.mxu0 0.0
        %911 = vmatpush1.msra.mxu0 0.0
        %912 = vmatprep.subr.mxu0 0.0
        %913 = vmatpush1.msra.mxu0 0.0
        %914 = vmatprep.subr.mxu0 0.0
        %915 = vmatpush1.msra.mxu0 0.0
        %916 = vmatprep.subr.mxu0 0.0
        %917 = vmatpush1.msra.mxu0 0.0
        %918 = vmatprep.subr.mxu0 0.0
        %919 = vmatpush1.msra.mxu0 0.0
        %920 = vmatprep.subr.mxu0 0.0
        %921 = vmatpush1.msra.mxu0 0.0
        %922 = vmatprep.subr.mxu0 0.0
        %923 = vmatpush1.msra.mxu0 0.0
        %924 = vmatprep.subr.mxu0 0.0
        %925 = vmatpush1.msra.mxu0 0.0
        %926 = vmatprep.subr.mxu0 0.0
        %927 = vmatpush1.msra.mxu0 0.0
        %928 = vmatprep.subr.mxu0 0.0
        %929 = vmatpush1.msra.mxu0 0.0
        %930 = vmatprep.subr.mxu0 0.0
        %931 = vmatpush1.msra.mxu0 0.0
        %932 = vmatprep.subr.mxu0 0.0
        %933 = vmatpush1.msra.mxu0 0.0
        %934 = vmatprep.subr.mxu0 0.0
        %935 = vmatpush1.msra.mxu0 0.0
        %936 = vmatprep.mubr.f32.mxu0 0.0
        %937 = vmatmul.mubr.f32.gmra.mrb[0].mxu0 %v849
        %v938 = vpop.f32.mrb[0].mxu0
        %v939 = vadd.f32 %v871, %v938
        %v940 = vpop.f32.mrb[0].mxu0
        %941 = vdwg.mxu0
        %s942 = scalar_lea.vmem [#allocation6], 512
        %v943 = vld [vmem:[%s942] sm:$0xff]
        %v944 = vld [vmem:[%s942 + $0x8] sm:$0xff]
        %v945 = vld [vmem:[%s942 + $0x10] sm:$0xff]
        %v946 = vld [vmem:[%s942 + $0x18] sm:$0xff]
        %v947 = vld [vmem:[%s942 + $0x20] sm:$0xff]
        %v948 = vld [vmem:[%s942 + $0x28] sm:$0xff]
        %v949 = vld [vmem:[%s942 + $0x30] sm:$0xff]
        %v950 = vld [vmem:[%s942 + $0x38] sm:$0xff]
        %v951 = vld [vmem:[%s942 + $0x40] sm:$0xff]
        %v952 = vld [vmem:[%s942 + $0x48] sm:$0xff]
        %v953 = vld [vmem:[%s942 + $0x50] sm:$0xff]
        %v954 = vld [vmem:[%s942 + $0x58] sm:$0xff]
        %v955 = vld [vmem:[%s942 + $0x60] sm:$0xff]
        %v956 = vld [vmem:[%s942 + $0x68] sm:$0xff]
        %v957 = vld [vmem:[%s942 + $0x70] sm:$0xff]
        %v958 = vld [vmem:[%s942 + $0x78] sm:$0xff]
        %s959 = scalar_lea.vmem %s3, 4
        %v960 = vld [vmem:[%s959] sm:$0x1]
        %961 = vmatprep.subr.mxu0 0.0
        %962 = vmatpush1.msra.mxu0 %v943
        %963 = vmatprep.subr.mxu0 0.0
        %964 = vmatpush1.msra.mxu0 %v944
        %965 = vmatprep.subr.mxu0 0.0
        %966 = vmatpush1.msra.mxu0 %v945
        %967 = vmatprep.subr.mxu0 0.0
        %968 = vmatpush1.msra.mxu0 %v946
        %969 = vmatprep.subr.mxu0 0.0
        %970 = vmatpush1.msra.mxu0 %v947
        %971 = vmatprep.subr.mxu0 0.0
        %972 = vmatpush1.msra.mxu0 %v948
        %973 = vmatprep.subr.mxu0 0.0
        %974 = vmatpush1.msra.mxu0 %v949
        %975 = vmatprep.subr.mxu0 0.0
        %976 = vmatpush1.msra.mxu0 %v950
        %977 = vmatprep.subr.mxu0 0.0
        %978 = vmatpush1.msra.mxu0 %v951
        %979 = vmatprep.subr.mxu0 0.0
        %980 = vmatpush1.msra.mxu0 %v952
        %981 = vmatprep.subr.mxu0 0.0
        %982 = vmatpush1.msra.mxu0 %v953
        %983 = vmatprep.subr.mxu0 0.0
        %984 = vmatpush1.msra.mxu0 %v954
        %985 = vmatprep.subr.mxu0 0.0
        %986 = vmatpush1.msra.mxu0 %v955
        %987 = vmatprep.subr.mxu0 0.0
        %988 = vmatpush1.msra.mxu0 %v956
        %989 = vmatprep.subr.mxu0 0.0
        %990 = vmatpush1.msra.mxu0 %v957
        %991 = vmatprep.subr.mxu0 0.0
        %992 = vmatpush1.msra.mxu0 %v958
        %993 = vmatprep.subr.mxu0 0.0
        %994 = vmatpush1.msra.mxu0 0.0
        %995 = vmatprep.subr.mxu0 0.0
        %996 = vmatpush1.msra.mxu0 0.0
        %997 = vmatprep.subr.mxu0 0.0
        %998 = vmatpush1.msra.mxu0 0.0
        %999 = vmatprep.subr.mxu0 0.0
        %1000 = vmatpush1.msra.mxu0 0.0
        %1001 = vmatprep.subr.mxu0 0.0
        %1002 = vmatpush1.msra.mxu0 0.0
        %1003 = vmatprep.subr.mxu0 0.0
        %1004 = vmatpush1.msra.mxu0 0.0
        %1005 = vmatprep.subr.mxu0 0.0
        %1006 = vmatpush1.msra.mxu0 0.0
        %1007 = vmatprep.subr.mxu0 0.0
        %1008 = vmatpush1.msra.mxu0 0.0
        %1009 = vmatprep.subr.mxu0 0.0
        %1010 = vmatpush1.msra.mxu0 0.0
        %1011 = vmatprep.subr.mxu0 0.0
        %1012 = vmatpush1.msra.mxu0 0.0
        %1013 = vmatprep.subr.mxu0 0.0
        %1014 = vmatpush1.msra.mxu0 0.0
        %1015 = vmatprep.subr.mxu0 0.0
        %1016 = vmatpush1.msra.mxu0 0.0
        %1017 = vmatprep.subr.mxu0 0.0
        %1018 = vmatpush1.msra.mxu0 0.0
        %1019 = vmatprep.subr.mxu0 0.0
        %1020 = vmatpush1.msra.mxu0 0.0
        %1021 = vmatprep.subr.mxu0 0.0
        %1022 = vmatpush1.msra.mxu0 0.0
        %1023 = vmatprep.subr.mxu0 0.0
        %1024 = vmatpush1.msra.mxu0 0.0
        %1025 = vmatprep.mubr.f32.mxu0 0.0
        %1026 = vmatmul.mubr.f32.gmra.mrb[0].mxu0 %v849
        %v1027 = vpop.f32.mrb[0].mxu0
        %v1028 = vadd.f32 %v960, %v1027
        %v1029 = vpop.f32.mrb[0].mxu0
        %1030 = vdwg.mxu0
        %s1031 = scalar_lea.vmem [#allocation6], 640
        %v1032 = vld [vmem:[%s1031] sm:$0xff]
        %v1033 = vld [vmem:[%s1031 + $0x8] sm:$0xff]
        %v1034 = vld [vmem:[%s1031 + $0x10] sm:$0xff]
        %v1035 = vld [vmem:[%s1031 + $0x18] sm:$0xff]
        %v1036 = vld [vmem:[%s1031 + $0x20] sm:$0xff]
        %v1037 = vld [vmem:[%s1031 + $0x28] sm:$0xff]
        %v1038 = vld [vmem:[%s1031 + $0x30] sm:$0xff]
        %v1039 = vld [vmem:[%s1031 + $0x38] sm:$0xff]
        %v1040 = vld [vmem:[%s1031 + $0x40] sm:$0xff]
        %v1041 = vld [vmem:[%s1031 + $0x48] sm:$0xff]
        %v1042 = vld [vmem:[%s1031 + $0x50] sm:$0xff]
        %v1043 = vld [vmem:[%s1031 + $0x58] sm:$0xff]
        %v1044 = vld [vmem:[%s1031 + $0x60] sm:$0xff]
        %v1045 = vld [vmem:[%s1031 + $0x68] sm:$0xff]
        %v1046 = vld [vmem:[%s1031 + $0x70] sm:$0xff]
        %v1047 = vld [vmem:[%s1031 + $0x78] sm:$0xff]
        %s1048 = scalar_lea.vmem %s3, 5
        %v1049 = vld [vmem:[%s1048] sm:$0x1]
        %1050 = vmatprep.subr.mxu0 0.0
        %1051 = vmatpush1.msra.mxu0 %v1032
        %1052 = vmatprep.subr.mxu0 0.0
        %1053 = vmatpush1.msra.mxu0 %v1033
        %1054 = vmatprep.subr.mxu0 0.0
        %1055 = vmatpush1.msra.mxu0 %v1034
        %1056 = vmatprep.subr.mxu0 0.0
        %1057 = vmatpush1.msra.mxu0 %v1035
        %1058 = vmatprep.subr.mxu0 0.0
        %1059 = vmatpush1.msra.mxu0 %v1036
        %1060 = vmatprep.subr.mxu0 0.0
        %1061 = vmatpush1.msra.mxu0 %v1037
        %1062 = vmatprep.subr.mxu0 0.0
        %1063 = vmatpush1.msra.mxu0 %v1038
        %1064 = vmatprep.subr.mxu0 0.0
        %1065 = vmatpush1.msra.mxu0 %v1039
        %1066 = vmatprep.subr.mxu0 0.0
        %1067 = vmatpush1.msra.mxu0 %v1040
        %1068 = vmatprep.subr.mxu0 0.0
        %1069 = vmatpush1.msra.mxu0 %v1041
        %1070 = vmatprep.subr.mxu0 0.0
        %1071 = vmatpush1.msra.mxu0 %v1042
        %1072 = vmatprep.subr.mxu0 0.0
        %1073 = vmatpush1.msra.mxu0 %v1043
        %1074 = vmatprep.subr.mxu0 0.0
        %1075 = vmatpush1.msra.mxu0 %v1044
        %1076 = vmatprep.subr.mxu0 0.0
        %1077 = vmatpush1.msra.mxu0 %v1045
        %1078 = vmatprep.subr.mxu0 0.0
        %1079 = vmatpush1.msra.mxu0 %v1046
        %1080 = vmatprep.subr.mxu0 0.0
        %1081 = vmatpush1.msra.mxu0 %v1047
        %1082 = vmatprep.subr.mxu0 0.0
        %1083 = vmatpush1.msra.mxu0 0.0
        %1084 = vmatprep.subr.mxu0 0.0
        %1085 = vmatpush1.msra.mxu0 0.0
        %1086 = vmatprep.subr.mxu0 0.0
        %1087 = vmatpush1.msra.mxu0 0.0
        %1088 = vmatprep.subr.mxu0 0.0
        %1089 = vmatpush1.msra.mxu0 0.0
        %1090 = vmatprep.subr.mxu0 0.0
        %1091 = vmatpush1.msra.mxu0 0.0
        %1092 = vmatprep.subr.mxu0 0.0
        %1093 = vmatpush1.msra.mxu0 0.0
        %1094 = vmatprep.subr.mxu0 0.0
        %1095 = vmatpush1.msra.mxu0 0.0
        %1096 = vmatprep.subr.mxu0 0.0
        %1097 = vmatpush1.msra.mxu0 0.0
        %1098 = vmatprep.subr.mxu0 0.0
        %1099 = vmatpush1.msra.mxu0 0.0
        %1100 = vmatprep.subr.mxu0 0.0
        %1101 = vmatpush1.msra.mxu0 0.0
        %1102 = vmatprep.subr.mxu0 0.0
        %1103 = vmatpush1.msra.mxu0 0.0
        %1104 = vmatprep.subr.mxu0 0.0
        %1105 = vmatpush1.msra.mxu0 0.0
        %1106 = vmatprep.subr.mxu0 0.0
        %1107 = vmatpush1.msra.mxu0 0.0
        %1108 = vmatprep.subr.mxu0 0.0
        %1109 = vmatpush1.msra.mxu0 0.0
        %1110 = vmatprep.subr.mxu0 0.0
        %1111 = vmatpush1.msra.mxu0 0.0
        %1112 = vmatprep.subr.mxu0 0.0
        %1113 = vmatpush1.msra.mxu0 0.0
        %1114 = vmatprep.mubr.f32.mxu0 0.0
        %1115 = vmatmul.mubr.f32.gmra.mrb[0].mxu0 %v849
        %v1116 = vpop.f32.mrb[0].mxu0
        %v1117 = vadd.f32 %v1049, %v1116
        %v1118 = vpop.f32.mrb[0].mxu0
        %1119 = vdwg.mxu0
        %s1120 = scalar_lea.vmem [#allocation8], 384
        %v1121 = vld [vmem:[%s1120] sm:$0xff]
        %v1122 = vld [vmem:[%s1120 + $0x8] sm:$0xff]
        %v1123 = vld [vmem:[%s1120 + $0x10] sm:$0xff]
        %v1124 = vld [vmem:[%s1120 + $0x18] sm:$0xff]
        %v1125 = vld [vmem:[%s1120 + $0x20] sm:$0xff]
        %v1126 = vld [vmem:[%s1120 + $0x28] sm:$0xff]
        %v1127 = vld [vmem:[%s1120 + $0x30] sm:$0xff]
        %v1128 = vld [vmem:[%s1120 + $0x38] sm:$0xff]
        %v1129 = vld [vmem:[%s1120 + $0x40] sm:$0xff]
        %v1130 = vld [vmem:[%s1120 + $0x48] sm:$0xff]
        %v1131 = vld [vmem:[%s1120 + $0x50] sm:$0xff]
        %v1132 = vld [vmem:[%s1120 + $0x58] sm:$0xff]
        %v1133 = vld [vmem:[%s1120 + $0x60] sm:$0xff]
        %v1134 = vld [vmem:[%s1120 + $0x68] sm:$0xff]
        %v1135 = vld [vmem:[%s1120 + $0x70] sm:$0xff]
        %v1136 = vld [vmem:[%s1120 + $0x78] sm:$0xff]
        %s1137 = scalar_lea.vmem %s4, 3
        %v1138 = vld [vmem:[%s1137] sm:$0x1]
        %1139 = vmatprep.subr.mxu0 0.0
        %1140 = vmatpush1.msra.mxu0 %v1121
        %1141 = vmatprep.subr.mxu0 0.0
        %1142 = vmatpush1.msra.mxu0 %v1122
        %1143 = vmatprep.subr.mxu0 0.0
        %1144 = vmatpush1.msra.mxu0 %v1123
        %1145 = vmatprep.subr.mxu0 0.0
        %1146 = vmatpush1.msra.mxu0 %v1124
        %1147 = vmatprep.subr.mxu0 0.0
        %1148 = vmatpush1.msra.mxu0 %v1125
        %1149 = vmatprep.subr.mxu0 0.0
        %1150 = vmatpush1.msra.mxu0 %v1126
        %1151 = vmatprep.subr.mxu0 0.0
        %1152 = vmatpush1.msra.mxu0 %v1127
        %1153 = vmatprep.subr.mxu0 0.0
        %1154 = vmatpush1.msra.mxu0 %v1128
        %1155 = vmatprep.subr.mxu0 0.0
        %1156 = vmatpush1.msra.mxu0 %v1129
        %1157 = vmatprep.subr.mxu0 0.0
        %1158 = vmatpush1.msra.mxu0 %v1130
        %1159 = vmatprep.subr.mxu0 0.0
        %1160 = vmatpush1.msra.mxu0 %v1131
        %1161 = vmatprep.subr.mxu0 0.0
        %1162 = vmatpush1.msra.mxu0 %v1132
        %1163 = vmatprep.subr.mxu0 0.0
        %1164 = vmatpush1.msra.mxu0 %v1133
        %1165 = vmatprep.subr.mxu0 0.0
        %1166 = vmatpush1.msra.mxu0 %v1134
        %1167 = vmatprep.subr.mxu0 0.0
        %1168 = vmatpush1.msra.mxu0 %v1135
        %1169 = vmatprep.subr.mxu0 0.0
        %1170 = vmatpush1.msra.mxu0 %v1136
        %1171 = vmatprep.subr.mxu0 0.0
        %1172 = vmatpush1.msra.mxu0 0.0
        %1173 = vmatprep.subr.mxu0 0.0
        %1174 = vmatpush1.msra.mxu0 0.0
        %1175 = vmatprep.subr.mxu0 0.0
        %1176 = vmatpush1.msra.mxu0 0.0
        %1177 = vmatprep.subr.mxu0 0.0
        %1178 = vmatpush1.msra.mxu0 0.0
        %1179 = vmatprep.subr.mxu0 0.0
        %1180 = vmatpush1.msra.mxu0 0.0
        %1181 = vmatprep.subr.mxu0 0.0
        %1182 = vmatpush1.msra.mxu0 0.0
        %1183 = vmatprep.subr.mxu0 0.0
        %1184 = vmatpush1.msra.mxu0 0.0
        %1185 = vmatprep.subr.mxu0 0.0
        %1186 = vmatpush1.msra.mxu0 0.0
        %1187 = vmatprep.subr.mxu0 0.0
        %1188 = vmatpush1.msra.mxu0 0.0
        %1189 = vmatprep.subr.mxu0 0.0
        %1190 = vmatpush1.msra.mxu0 0.0
        %1191 = vmatprep.subr.mxu0 0.0
        %1192 = vmatpush1.msra.mxu0 0.0
        %1193 = vmatprep.subr.mxu0 0.0
        %1194 = vmatpush1.msra.mxu0 0.0
        %1195 = vmatprep.subr.mxu0 0.0
        %1196 = vmatpush1.msra.mxu0 0.0
        %1197 = vmatprep.subr.mxu0 0.0
        %1198 = vmatpush1.msra.mxu0 0.0
        %1199 = vmatprep.subr.mxu0 0.0
        %1200 = vmatpush1.msra.mxu0 0.0
        %1201 = vmatprep.subr.mxu0 0.0
        %1202 = vmatpush1.msra.mxu0 0.0
        %1203 = vmatprep.mubr.f32.mxu0 0.0
        %1204 = vmatmul.mubr.f32.gmra.mrb[0].mxu0 %v852
        %v1205 = vpop.f32.mrb[0].mxu0
        %v1206 = vadd.f32 %v1138, %v1205
        %v1207 = vpop.f32.mrb[0].mxu0
        %1208 = vdwg.mxu0
        %s1209 = scalar_lea.vmem [#allocation8], 512
        %v1210 = vld [vmem:[%s1209] sm:$0xff]
        %v1211 = vld [vmem:[%s1209 + $0x8] sm:$0xff]
        %v1212 = vld [vmem:[%s1209 + $0x10] sm:$0xff]
        %v1213 = vld [vmem:[%s1209 + $0x18] sm:$0xff]
        %v1214 = vld [vmem:[%s1209 + $0x20] sm:$0xff]
        %v1215 = vld [vmem:[%s1209 + $0x28] sm:$0xff]
        %v1216 = vld [vmem:[%s1209 + $0x30] sm:$0xff]
        %v1217 = vld [vmem:[%s1209 + $0x38] sm:$0xff]
        %v1218 = vld [vmem:[%s1209 + $0x40] sm:$0xff]
        %v1219 = vld [vmem:[%s1209 + $0x48] sm:$0xff]
        %v1220 = vld [vmem:[%s1209 + $0x50] sm:$0xff]
        %v1221 = vld [vmem:[%s1209 + $0x58] sm:$0xff]
        %v1222 = vld [vmem:[%s1209 + $0x60] sm:$0xff]
        %v1223 = vld [vmem:[%s1209 + $0x68] sm:$0xff]
        %v1224 = vld [vmem:[%s1209 + $0x70] sm:$0xff]
        %v1225 = vld [vmem:[%s1209 + $0x78] sm:$0xff]
        %s1226 = scalar_lea.vmem %s4, 4
        %v1227 = vld [vmem:[%s1226] sm:$0x1]
        %1228 = vmatprep.subr.mxu0 0.0
        %1229 = vmatpush1.msra.mxu0 %v1210
        %1230 = vmatprep.subr.mxu0 0.0
        %1231 = vmatpush1.msra.mxu0 %v1211
        %1232 = vmatprep.subr.mxu0 0.0
        %1233 = vmatpush1.msra.mxu0 %v1212
        %1234 = vmatprep.subr.mxu0 0.0
        %1235 = vmatpush1.msra.mxu0 %v1213
        %1236 = vmatprep.subr.mxu0 0.0
        %1237 = vmatpush1.msra.mxu0 %v1214
        %1238 = vmatprep.subr.mxu0 0.0
        %1239 = vmatpush1.msra.mxu0 %v1215
        %1240 = vmatprep.subr.mxu0 0.0
        %1241 = vmatpush1.msra.mxu0 %v1216
        %1242 = vmatprep.subr.mxu0 0.0
        %1243 = vmatpush1.msra.mxu0 %v1217
        %1244 = vmatprep.subr.mxu0 0.0
        %1245 = vmatpush1.msra.mxu0 %v1218
        %1246 = vmatprep.subr.mxu0 0.0
        %1247 = vmatpush1.msra.mxu0 %v1219
        %1248 = vmatprep.subr.mxu0 0.0
        %1249 = vmatpush1.msra.mxu0 %v1220
        %1250 = vmatprep.subr.mxu0 0.0
        %1251 = vmatpush1.msra.mxu0 %v1221
        %1252 = vmatprep.subr.mxu0 0.0
        %1253 = vmatpush1.msra.mxu0 %v1222
        %1254 = vmatprep.subr.mxu0 0.0
        %1255 = vmatpush1.msra.mxu0 %v1223
        %1256 = vmatprep.subr.mxu0 0.0
        %1257 = vmatpush1.msra.mxu0 %v1224
        %1258 = vmatprep.subr.mxu0 0.0
        %1259 = vmatpush1.msra.mxu0 %v1225
        %1260 = vmatprep.subr.mxu0 0.0
        %1261 = vmatpush1.msra.mxu0 0.0
        %1262 = vmatprep.subr.mxu0 0.0
        %1263 = vmatpush1.msra.mxu0 0.0
        %1264 = vmatprep.subr.mxu0 0.0
        %1265 = vmatpush1.msra.mxu0 0.0
        %1266 = vmatprep.subr.mxu0 0.0
        %1267 = vmatpush1.msra.mxu0 0.0
        %1268 = vmatprep.subr.mxu0 0.0
        %1269 = vmatpush1.msra.mxu0 0.0
        %1270 = vmatprep.subr.mxu0 0.0
        %1271 = vmatpush1.msra.mxu0 0.0
        %1272 = vmatprep.subr.mxu0 0.0
        %1273 = vmatpush1.msra.mxu0 0.0
        %1274 = vmatprep.subr.mxu0 0.0
        %1275 = vmatpush1.msra.mxu0 0.0
        %1276 = vmatprep.subr.mxu0 0.0
        %1277 = vmatpush1.msra.mxu0 0.0
        %1278 = vmatprep.subr.mxu0 0.0
        %1279 = vmatpush1.msra.mxu0 0.0
        %1280 = vmatprep.subr.mxu0 0.0
        %1281 = vmatpush1.msra.mxu0 0.0
        %1282 = vmatprep.subr.mxu0 0.0
        %1283 = vmatpush1.msra.mxu0 0.0
        %1284 = vmatprep.subr.mxu0 0.0
        %1285 = vmatpush1.msra.mxu0 0.0
        %1286 = vmatprep.subr.mxu0 0.0
        %1287 = vmatpush1.msra.mxu0 0.0
        %1288 = vmatprep.subr.mxu0 0.0
        %1289 = vmatpush1.msra.mxu0 0.0
        %1290 = vmatprep.subr.mxu0 0.0
        %1291 = vmatpush1.msra.mxu0 0.0
        %1292 = vmatprep.mubr.f32.mxu0 0.0
        %1293 = vmatmul.mubr.f32.gmra.mrb[0].mxu0 %v852
        %v1294 = vpop.f32.mrb[0].mxu0
        %v1295 = vadd.f32 %v1227, %v1294
        %v1296 = vpop.f32.mrb[0].mxu0
        %1297 = vdwg.mxu0
        %s1298 = scalar_lea.vmem [#allocation8], 640
        %v1299 = vld [vmem:[%s1298] sm:$0xff]
        %v1300 = vld [vmem:[%s1298 + $0x8] sm:$0xff]
        %v1301 = vld [vmem:[%s1298 + $0x10] sm:$0xff]
        %v1302 = vld [vmem:[%s1298 + $0x18] sm:$0xff]
        %v1303 = vld [vmem:[%s1298 + $0x20] sm:$0xff]
        %v1304 = vld [vmem:[%s1298 + $0x28] sm:$0xff]
        %v1305 = vld [vmem:[%s1298 + $0x30] sm:$0xff]
        %v1306 = vld [vmem:[%s1298 + $0x38] sm:$0xff]
        %v1307 = vld [vmem:[%s1298 + $0x40] sm:$0xff]
        %v1308 = vld [vmem:[%s1298 + $0x48] sm:$0xff]
        %v1309 = vld [vmem:[%s1298 + $0x50] sm:$0xff]
        %v1310 = vld [vmem:[%s1298 + $0x58] sm:$0xff]
        %v1311 = vld [vmem:[%s1298 + $0x60] sm:$0xff]
        %v1312 = vld [vmem:[%s1298 + $0x68] sm:$0xff]
        %v1313 = vld [vmem:[%s1298 + $0x70] sm:$0xff]
        %v1314 = vld [vmem:[%s1298 + $0x78] sm:$0xff]
        %s1315 = scalar_lea.vmem %s4, 5
        %v1316 = vld [vmem:[%s1315] sm:$0x1]
        %1317 = vmatprep.subr.mxu0 0.0
        %1318 = vmatpush1.msra.mxu0 %v1299
        %1319 = vmatprep.subr.mxu0 0.0
        %1320 = vmatpush1.msra.mxu0 %v1300
        %1321 = vmatprep.subr.mxu0 0.0
        %1322 = vmatpush1.msra.mxu0 %v1301
        %1323 = vmatprep.subr.mxu0 0.0
        %1324 = vmatpush1.msra.mxu0 %v1302
        %1325 = vmatprep.subr.mxu0 0.0
        %1326 = vmatpush1.msra.mxu0 %v1303
        %1327 = vmatprep.subr.mxu0 0.0
        %1328 = vmatpush1.msra.mxu0 %v1304
        %1329 = vmatprep.subr.mxu0 0.0
        %1330 = vmatpush1.msra.mxu0 %v1305
        %1331 = vmatprep.subr.mxu0 0.0
        %1332 = vmatpush1.msra.mxu0 %v1306
        %1333 = vmatprep.subr.mxu0 0.0
        %1334 = vmatpush1.msra.mxu0 %v1307
        %1335 = vmatprep.subr.mxu0 0.0
        %1336 = vmatpush1.msra.mxu0 %v1308
        %1337 = vmatprep.subr.mxu0 0.0
        %1338 = vmatpush1.msra.mxu0 %v1309
        %1339 = vmatprep.subr.mxu0 0.0
        %1340 = vmatpush1.msra.mxu0 %v1310
        %1341 = vmatprep.subr.mxu0 0.0
        %1342 = vmatpush1.msra.mxu0 %v1311
        %1343 = vmatprep.subr.mxu0 0.0
        %1344 = vmatpush1.msra.mxu0 %v1312
        %1345 = vmatprep.subr.mxu0 0.0
        %1346 = vmatpush1.msra.mxu0 %v1313
        %1347 = vmatprep.subr.mxu0 0.0
        %1348 = vmatpush1.msra.mxu0 %v1314
        %1349 = vmatprep.subr.mxu0 0.0
        %1350 = vmatpush1.msra.mxu0 0.0
        %1351 = vmatprep.subr.mxu0 0.0
        %1352 = vmatpush1.msra.mxu0 0.0
        %1353 = vmatprep.subr.mxu0 0.0
        %1354 = vmatpush1.msra.mxu0 0.0
        %1355 = vmatprep.subr.mxu0 0.0
        %1356 = vmatpush1.msra.mxu0 0.0
        %1357 = vmatprep.subr.mxu0 0.0
        %1358 = vmatpush1.msra.mxu0 0.0
        %1359 = vmatprep.subr.mxu0 0.0
        %1360 = vmatpush1.msra.mxu0 0.0
        %1361 = vmatprep.subr.mxu0 0.0
        %1362 = vmatpush1.msra.mxu0 0.0
        %1363 = vmatprep.subr.mxu0 0.0
        %1364 = vmatpush1.msra.mxu0 0.0
        %1365 = vmatprep.subr.mxu0 0.0
        %1366 = vmatpush1.msra.mxu0 0.0
        %1367 = vmatprep.subr.mxu0 0.0
        %1368 = vmatpush1.msra.mxu0 0.0
        %1369 = vmatprep.subr.mxu0 0.0
        %1370 = vmatpush1.msra.mxu0 0.0
        %1371 = vmatprep.subr.mxu0 0.0
        %1372 = vmatpush1.msra.mxu0 0.0
        %1373 = vmatprep.subr.mxu0 0.0
        %1374 = vmatpush1.msra.mxu0 0.0
        %1375 = vmatprep.subr.mxu0 0.0
        %1376 = vmatpush1.msra.mxu0 0.0
        %1377 = vmatprep.subr.mxu0 0.0
        %1378 = vmatpush1.msra.mxu0 0.0
        %1379 = vmatprep.subr.mxu0 0.0
        %1380 = vmatpush1.msra.mxu0 0.0
        %1381 = vmatprep.mubr.f32.mxu0 0.0
        %1382 = vmatmul.mubr.f32.gmra.mrb[0].mxu0 %v852
        %v1383 = vpop.f32.mrb[0].mxu0
        %v1384 = vadd.f32 %v1316, %v1383
        %v1385 = vpop.f32.mrb[0].mxu0
        %1386 = vdwg.mxu0
        %v1387 = vadd.f32 %v939, %v1206
        %v1388 = vxor.u32 %v1387, 2147483648
        %v1389 = vmul.f32 %v1388, 1.442695
        %v1390 = vpow.pop %v1389
        %v1391 = vadd.f32 %v1390, 1.0
        %v1392 = vrcp.pop %v1391
        %v1393 = vmul.f32 1.0, %v1392
        %v1394 = vadd.f32 %v1028, %v1295
        %v1395 = vxor.u32 %v1394, 2147483648
        %v1396 = vmul.f32 %v1395, 1.442695
        %v1397 = vpow.pop %v1396
        %v1398 = vadd.f32 %v1397, 1.0
        %v1399 = vrcp.pop %v1398
        %v1400 = vmul.f32 1.0, %v1399
        %v1401 = vmul.f32 %v1393, %v1384
        %v1402 = vadd.f32 %v1117, %v1401
        %v1403 = vtanh.pop %v1402
        %v1404 = vsub.f32 1.0, %v1400
        %v1405 = vmul.f32 %v1404, %v1403
        %v1406 = vmul.f32 %v1400, %v852
        %v1407 = vadd.f32 %v1405, %v1406
        %1408 = vst [vmem:[%s851] sm:$0x1] %v1407
        %1409 = vst [vmem:[%s288] sm:$0x1] %v1407
        %v1410 = vld [vmem:[#allocation2] sm:$0x1]
        %v1411 = vld [vmem:[#allocation2 + $0x1] sm:$0x1]
        %1412 = vst [vmem:[#allocation10] sm:$0x1] %v1410
        %1413 = vst [vmem:[#allocation10 + $0x1] sm:$0x1] %v1411
        %s1414 = sand.u32 %s144, 1
        %s1415 = scalar_lea.sflag [#allocation5], %s1414
        %s1416 = sand.u32 %s144, 1
        %s1417 = scalar_lea.vmem [#allocation9], %s1416
        // Predicated region
        $region57: #{tpu_custom_call.1} parent=39 // pred_check
          %p1418 = pneg %p154
        $region58: #{tpu_custom_call.1} parent=39 // pred_check_branch
          %1420 = sbr.rel (%p1418) target = $region60
        $region59: #{tpu_custom_call.1} parent=39 // pred_region
          %s1422 = ssub.s32 16, 16
          %1423 = vsyncadd %s1415, %s1422
          %s1424 = smul.addr %s26, 16
          %s1425 = scalar_lea.hbm %s5, %s1424
          %s1427 = sshll.u32 %s1417, 4
          %s1428 = int_to_ptr.vmem [resolvable:$true] %s1427
          %1430 = dma.vmem_to_hbm [thread:$0]  %s1428, 16, %s1425, %s1415
        $region60: #{tpu_custom_call.1} parent=39 // pred_fallthru
          _
        // Predicated region
        $region61: #{tpu_custom_call.1} parent=39 // pred_check
          %p1431 = pneg %p175
        $region62: #{tpu_custom_call.1} parent=39 // pred_check_branch
          %1433 = sbr.rel (%p1431) target = $region64
        $region63: #{tpu_custom_call.1} parent=39 // pred_region
          %s1435 = ssub.s32 32, 32
          %1436 = vsyncadd [#allocation11], %s1435
          %s1437 = sshll.u32 [#allocation10], 4
          %s1438 = int_to_ptr.vmem [resolvable:$true] %s1437
          %1443 = dma.vmem_to_hbm [thread:$0]  %s1438, 32, %s6, [#allocation11], 16, 16, 1
        $region64: #{tpu_custom_call.1} parent=39 // pred_fallthru
          _
        // Predicated region
        $region65: #{tpu_custom_call.1} parent=39 // pred_check
          %p1444 = pneg %p175
        $region66: #{tpu_custom_call.1} parent=39 // pred_check_branch
          %1446 = sbr.rel (%p1444) target = $region68
        $region67: #{tpu_custom_call.1} parent=39 // pred_region
          %1447 = dma.done [#allocation11], 32
        $region68: #{tpu_custom_call.1} parent=39 // pred_fallthru
          _
      $region40: #{tpu_custom_call.1} parent=5 // pred_fallthru
        _
      %p1448 = scmp.le.s32.totalorder 2, %s21
      // Predicated region
      $region69: #{tpu_custom_call.1} parent=5 // pred_check
        %p1449 = pneg %p1448
      $region70: #{tpu_custom_call.1} parent=5 // pred_check_branch
        %1451 = sbr.rel (%p1449) target = $region72
      $region71: #{tpu_custom_call.1} parent=5 // pred_region
        %s1452 = ssub.s32 %s21, 2
        // Predicated region
        $region73: #{tpu_custom_call.1} parent=71 // pred_check
          %p1453 = pneg %p160
        $region74: #{tpu_custom_call.1} parent=71 // pred_check_branch
          %1455 = sbr.rel (%p1453) target = $region76
        $region75: #{tpu_custom_call.1} parent=71 // pred_region
          %s1456 = sand.u32 %s145, 1
          %s1457 = scalar_lea.sflag [#allocation5], %s1456
          %s1458 = sand.u32 %s145, 1
          %s1459 = scalar_lea.vmem [#allocation9], %s1458
          %1460 = dma.done %s1457, 16
        $region76: #{tpu_custom_call.1} parent=71 // pred_fallthru
          _
      $region72: #{tpu_custom_call.1} parent=5 // pred_fallthru
        _
    $region6: #{tpu_custom_call.1} parent=1 // loop_footer
      %s25 = sadd.s32 1, %s21
    $region7: #{tpu_custom_call.1} parent=1 // loop_footer_branch
      %20 = sbr.rel target = $region3
    $region8: #{tpu_custom_call.1} parent=1 // loop_exit
      _
    %1461 = vsyncpa [#allocation4], 1
    %s1462 = scalar_lea.sflag [#allocation4], 1
    %1463 = vsyncpa %s1462, 1
    %1464 = vsyncpa [#allocation7], 1
    %1465 = vsyncpa [#allocation5], 1
    %s1466 = scalar_lea.sflag [#allocation5], 1
    %1467 = vsyncpa %s1466, 1
    %1468 = vsyncpa [#allocation11], 1

</llo_original>
